<compile_context>
chip_gen: v6e
topology: v6e:2x2x1
jax: 0.10.0
libtpu: 0.0.40
codegen_flags: <defaults>
</compile_context>

<pallas_src>
import math

import jax
import jax.numpy as jnp
import numpy as np
from jax import lax
from jax.experimental import pallas as pl
from jax.experimental.pallas import tpu as pltpu


def _round_up(x, m):
    return ((x + m - 1) // m) * m


def _make_exp_body(niter, cpg, cpg_p, np_p, id_base):
    """Kernel body for one group (static sizes baked in)."""

    def body(k1_ref, t_ref, out_ref):
        # k1_ref : (cpg_p, np_p)  term-1 slab (K placed at its final spatial offset)
        # t_ref  : (np_p, np_p)   folded composition operator for this group
        # out_ref: (cpg_p, np_p)  exp(K) slab
        k1 = k1_ref[...]

        # identity kernel: single diagonal at column offset id_base (in-register, no DMA)
        rows = lax.broadcasted_iota(jnp.int32, (cpg_p, np_p), 0)
        cols = lax.broadcasted_iota(jnp.int32, (cpg_p, np_p), 1)
        ident = jnp.where(
            jnp.logical_and(cols == rows + id_base, rows < cpg), 1.0, 0.0
        ).astype(jnp.float32)

        acc = k1 + ident                      # term i=1 : I + K
        ki = k1                               # running term K^i / i!
        for i in range(2, niter + 1):
            ki = jnp.dot(ki, t_ref[...],
                         preferred_element_type=jnp.float32) * (1.0 / float(i))
            acc = acc + ki
        out_ref[...] = acc                    # single lane-dense full-slab store

    return body


def conv_exponential(kernel, in_channels, out_channels, kernel_size, groups,
                     exp_niter=5):
    """JAX/Pallas port of ConvExponential.forward.

    kernel : (max_channels, max_channels // groups, ks, ks) float32 (OIHW).
    returns: (out_channels, in_channels // groups, hf, hf),  hf = exp_niter*(ks-1)+1.
    """
    maxc = max(in_channels, out_channels)
    cpg = maxc // groups
    ks = kernel_size
    cl = int(math.ceil((ks - 1) / 2))          # "ceil" pad used by the module
    hf = exp_niter * (ks - 1) + 1
    off1 = (exp_niter - 1) * cl                # final spatial offset of term 1
    npts = hf * hf * cpg                       # per-group logical lane width
    cpg_p = _round_up(max(cpg, 8), 8)          # sublane (row) padding
    np_p = _round_up(max(npts, 128), 128)      # lane (col) padding
    id_base = exp_niter * cl * (hf + 1) * cpg  # identity diagonal column offset

    # ---- wrapper-side layout plumbing (pure placement, no arithmetic) ----
    # OIHW -> per-group (o, c, a, b)
    w5 = kernel.reshape(groups, cpg, cpg, ks, ks).astype(jnp.float32)   # (g,o,c,a,b)

    # term-1 slab  S1[g, n, P, Q, m] = K_g[m, n, P-off1, Q-off1]
    blk = jnp.transpose(w5, (0, 2, 3, 4, 1))                            # (g,n,a,b,m)
    s1 = jnp.zeros((groups, cpg, hf, hf, cpg), jnp.float32)
    s1 = s1.at[:, :, off1:off1 + ks, off1:off1 + ks, :].set(blk)
    s1 = s1.reshape(groups, cpg, npts)
    k_init = jnp.zeros((groups, cpg_p, np_p), jnp.float32)              # zero padding!
    k_init = k_init.at[:, :cpg, :npts].set(s1)

    # folded operator  T_g[(P',Q',c),(P,Q,o)] = K_g[o, c, P-P'+cl, Q-Q'+cl] (banded)
    pos = jnp.arange(hf)
    delta = ((pos[None, None, :] - pos[None, :, None]) ==
             (jnp.arange(ks) - cl)[:, None, None]).astype(jnp.float32)  # (a, P', P)
    tg = jnp.einsum('apx,bqy,gocab->gpqcxyo', delta, delta, w5)
    tg = tg.reshape(groups, npts, npts)
    t_all = jnp.zeros((groups, np_p, np_p), jnp.float32)                # zero padding!
    t_all = t_all.at[:, :npts, :npts].set(tg)

    body = _make_exp_body(exp_niter, cpg, cpg_p, np_p, id_base)

    # explicit scoped-VMEM budget: double-buffered T + k1 + out blocks, plus margin
    block_bytes = 4 * (np_p * np_p + 2 * cpg_p * np_p)
    vmem_limit = int(min(max(2 * block_bytes + (4 << 20), 32 << 20), 100 << 20))

    out2d = pl.pallas_call(
        body,
        out_shape=jax.ShapeDtypeStruct((groups, cpg_p, np_p), jnp.float32),
        grid=(groups,),
        in_specs=[
            pl.BlockSpec((None, cpg_p, np_p), lambda g: (g, 0, 0)),
            pl.BlockSpec((None, np_p, np_p), lambda g: (g, 0, 0)),
        ],
        out_specs=pl.BlockSpec((None, cpg_p, np_p), lambda g: (g, 0, 0)),
        compiler_params=pltpu.CompilerParams(
            dimension_semantics=("parallel",),   # v7x: split groups across both TCs
            vmem_limit_bytes=vmem_limit,
        ),
    )(k_init, t_all)

    # padded per-group slab -> OIHW, then channel slicing exactly as the module does.
    out = out2d[:, :cpg, :npts].reshape(groups, cpg, hf, hf, cpg)   # (g, n, P, Q, o)
    out = jnp.transpose(out, (0, 4, 1, 2, 3))                        # (g, o, n, P, Q)
    out = out[:, :out_channels // groups, :in_channels // groups, :, :]
    return out.reshape(out_channels, in_channels // groups, hf, hf)


# ----------------------- pure-JAX reference (for checking) -----------------------
def _fast_matrix_conv_ref(m1, m2, groups):
    m, n, k1, k2 = m1.shape
    nb, mb, l1, l2 = m2.shape
    assert m == mb * groups
    x = jnp.transpose(m1, (1, 0, 2, 3))
    w = m2[:, :, ::-1, ::-1]
    r = jax.lax.conv_general_dilated(
        x, w, window_strides=(1, 1),
        padding=((l1 - 1, l1 - 1), (l2 - 1, l2 - 1)),
        dimension_numbers=("NCHW", "OIHW", "NCHW"),
        feature_group_count=groups,
        precision=jax.lax.Precision.HIGHEST)
    return jnp.transpose(r, (1, 0, 2, 3))


def conv_exponential_ref(kernel, in_channels, out_channels, kernel_size, groups,
                         exp_niter=5):
    ks = kernel_size
    cl = int(math.ceil((ks - 1) / 2))
    fl = int(math.floor((ks - 1) / 2))
    maxc = max(in_channels, out_channels)
    cpg = maxc // groups

    def pad_fn(x):
        return jnp.pad(x, ((0, 0), (0, 0), (cl, fl), (cl, fl)))

    ident = jnp.zeros((maxc, cpg, ks, ks), jnp.float32)
    eye_rep = jnp.tile(jnp.eye(cpg, dtype=jnp.float32), (groups, 1))
    ident = ident.at[:, :, cl, cl].set(eye_rep)

    kg = kernel + ident
    ki = kernel
    for i in range(2, exp_niter + 1):
        ki = _fast_matrix_conv_ref(ki, kernel, groups) / float(i)
        kg = pad_fn(kg) + ki
    H = kg.shape[-1]
    kg = kg.reshape(groups, cpg, cpg, H, H)
    kg = kg[:, :out_channels // groups, :in_channels // groups]
    return kg.reshape(out_channels, in_channels // groups, H, H)


if __name__ == "__main__":
    configs = [
        # (in_channels, out_channels, kernel_size, groups, exp_niter)
        (4, 8, 3, 2, 5),    # original config: odd ks, grouped, out > in
        (6, 6, 4, 3, 3),    # even ks (asymmetric ceil/floor padding path)
        (8, 4, 5, 1, 2),    # out < in, single group, larger ks
    ]
    key = jax.random.PRNGKey(0)
    for (cin, cout, ks, groups, niter) in configs:
        key, sub = jax.random.split(key)
        maxc = max(cin, cout)
        kernel = 0.1 * jax.random.normal(
            sub, (maxc, maxc // groups, ks, ks), dtype=jnp.float32)

        out = conv_exponential(kernel, cin, cout, ks, groups, niter)
        out = jax.block_until_ready(out)

        ref = conv_exponential_ref(kernel, cin, cout, ks, groups, niter)
        ref = jax.block_until_ready(ref)

        hf = niter * (ks - 1) + 1
        assert out.shape == ref.shape == (cout, cin // groups, hf, hf)
        np.testing.assert_allclose(np.asarray(out), np.asarray(ref),
                                   rtol=2e-4, atol=1e-5)
    print("KERNEL_OK")
</pallas_src>

<mosaic_0001>
module attributes {stable_mosaic.version = 11 : i64} {
  func.func @body(%arg0: i32, %arg1: memref<1x8x512xf32, #tpu.memory_space<vmem>>, %arg2: memref<1x512x512xf32, #tpu.memory_space<vmem>>, %arg3: memref<1x8x512xf32, #tpu.memory_space<vmem>>) attributes {dimension_semantics = [#tpu.dimension_semantics<parallel>], iteration_bounds = array<i64: 2>, scalar_prefetch = 0 : i64, scratch_operands = 0 : i64, tpu.core_type = #tpu.core_type<tc>, window_params = [{transform_indices = @transform_0, window_bounds = array<i64: 1, 8, 512>}, {transform_indices = @transform_1, window_bounds = array<i64: 1, 512, 512>}, {transform_indices = @transform_2, window_bounds = array<i64: 1, 8, 512>}]} {
    %c0 = arith.constant 0 : index
    %c0_0 = arith.constant 0 : index
    %c0_1 = arith.constant 0 : index
    %0 = vector.load %arg1[%c0, %c0_0, %c0_1] : memref<1x8x512xf32, #tpu.memory_space<vmem>>, vector<1x8x512xf32>
    %1 = vector.shape_cast %0 : vector<1x8x512xf32> to vector<8x512xf32>
    %2 = tpu.iota {dimensions = array<i32: 0>} : vector<8x512xi32>
    %3 = tpu.iota {dimensions = array<i32: 1>} : vector<8x512xi32>
    %c240_i32 = arith.constant 240 : i32
    %4 = vector.broadcast %c240_i32 : i32 to vector<8x512xi32>
    %5 = arith.addi %2, %4 : vector<8x512xi32>
    %6 = arith.cmpi eq, %3, %5 : vector<8x512xi32>
    %c4_i32 = arith.constant 4 : i32
    %7 = vector.broadcast %c4_i32 : i32 to vector<8x512xi32>
    %8 = arith.cmpi slt, %2, %7 : vector<8x512xi32>
    %9 = arith.andi %6, %8 : vector<8x512xi1>
    %cst = arith.constant 1.000000e+00 : f32
    %cst_2 = arith.constant 0.000000e+00 : f32
    %10 = vector.broadcast %cst : f32 to vector<8x512xf32>
    %11 = vector.broadcast %cst_2 : f32 to vector<8x512xf32>
    %12 = arith.select %9, %10, %11 : vector<8x512xi1>, vector<8x512xf32>
    %13 = arith.addf %1, %12 : vector<8x512xf32>
    %c0_3 = arith.constant 0 : index
    %c0_4 = arith.constant 0 : index
    %c0_5 = arith.constant 0 : index
    %14 = vector.load %arg2[%c0_3, %c0_4, %c0_5] : memref<1x512x512xf32, #tpu.memory_space<vmem>>, vector<1x512x512xf32>
    %15 = vector.shape_cast %14 : vector<1x512x512xf32> to vector<512x512xf32>
    %cst_6 = arith.constant dense<0.000000e+00> : vector<8x512xf32>
    %16 = tpu.matmul %1, %15, %cst_6 {dimension_numbers = #tpu.dot_dimension_numbers<[1], [0], [0], [1], [0, 0, 1, 1], [], []>} : vector<8x512xf32>, vector<512x512xf32>, vector<8x512xf32> -> vector<8x512xf32>
    %cst_7 = arith.constant 5.000000e-01 : f32
    %17 = vector.broadcast %cst_7 : f32 to vector<8x512xf32>
    %18 = arith.mulf %16, %17 : vector<8x512xf32>
    %19 = arith.addf %13, %18 : vector<8x512xf32>
    %c0_8 = arith.constant 0 : index
    %c0_9 = arith.constant 0 : index
    %c0_10 = arith.constant 0 : index
    %20 = vector.load %arg2[%c0_8, %c0_9, %c0_10] : memref<1x512x512xf32, #tpu.memory_space<vmem>>, vector<1x512x512xf32>
    %21 = vector.shape_cast %20 : vector<1x512x512xf32> to vector<512x512xf32>
    %cst_11 = arith.constant dense<0.000000e+00> : vector<8x512xf32>
    %22 = tpu.matmul %18, %21, %cst_11 {dimension_numbers = #tpu.dot_dimension_numbers<[1], [0], [0], [1], [0, 0, 1, 1], [], []>} : vector<8x512xf32>, vector<512x512xf32>, vector<8x512xf32> -> vector<8x512xf32>
    %cst_12 = arith.constant 0.333333343 : f32
    %23 = vector.broadcast %cst_12 : f32 to vector<8x512xf32>
    %24 = arith.mulf %22, %23 : vector<8x512xf32>
    %25 = arith.addf %19, %24 : vector<8x512xf32>
    %c0_13 = arith.constant 0 : index
    %c0_14 = arith.constant 0 : index
    %c0_15 = arith.constant 0 : index
    %26 = vector.load %arg2[%c0_13, %c0_14, %c0_15] : memref<1x512x512xf32, #tpu.memory_space<vmem>>, vector<1x512x512xf32>
    %27 = vector.shape_cast %26 : vector<1x512x512xf32> to vector<512x512xf32>
    %cst_16 = arith.constant dense<0.000000e+00> : vector<8x512xf32>
    %28 = tpu.matmul %24, %27, %cst_16 {dimension_numbers = #tpu.dot_dimension_numbers<[1], [0], [0], [1], [0, 0, 1, 1], [], []>} : vector<8x512xf32>, vector<512x512xf32>, vector<8x512xf32> -> vector<8x512xf32>
    %cst_17 = arith.constant 2.500000e-01 : f32
    %29 = vector.broadcast %cst_17 : f32 to vector<8x512xf32>
    %30 = arith.mulf %28, %29 : vector<8x512xf32>
    %31 = arith.addf %25, %30 : vector<8x512xf32>
    %c0_18 = arith.constant 0 : index
    %c0_19 = arith.constant 0 : index
    %c0_20 = arith.constant 0 : index
    %32 = vector.load %arg2[%c0_18, %c0_19, %c0_20] : memref<1x512x512xf32, #tpu.memory_space<vmem>>, vector<1x512x512xf32>
    %33 = vector.shape_cast %32 : vector<1x512x512xf32> to vector<512x512xf32>
    %cst_21 = arith.constant dense<0.000000e+00> : vector<8x512xf32>
    %34 = tpu.matmul %30, %33, %cst_21 {dimension_numbers = #tpu.dot_dimension_numbers<[1], [0], [0], [1], [0, 0, 1, 1], [], []>} : vector<8x512xf32>, vector<512x512xf32>, vector<8x512xf32> -> vector<8x512xf32>
    %cst_22 = arith.constant 2.000000e-01 : f32
    %35 = vector.broadcast %cst_22 : f32 to vector<8x512xf32>
    %36 = arith.mulf %34, %35 : vector<8x512xf32>
    %37 = arith.addf %31, %36 : vector<8x512xf32>
    %c0_23 = arith.constant 0 : index
    %c0_24 = arith.constant 0 : index
    %c0_25 = arith.constant 0 : index
    %38 = vector.load %arg3[%c0_23, %c0_24, %c0_25] : memref<1x8x512xf32, #tpu.memory_space<vmem>>, vector<1x8x512xf32>
    %39 = vector.shape_cast %38 : vector<1x8x512xf32> to vector<8x512xf32>
    %40 = vector.shape_cast %37 : vector<8x512xf32> to vector<1x8x512xf32>
    tpu.vector_store %arg3[%c0_23, %c0_24, %c0_25], %40 {strides = array<i32>} : memref<1x8x512xf32, #tpu.memory_space<vmem>>, vector<1x8x512xf32>,
    return
  }
  func.func @transform_0(%arg0: i32) -> (i32, i32, i32) {
    %c0_i32 = arith.constant 0 : i32
    %c0_i32_0 = arith.constant 0 : i32
    %c0_i32_1 = arith.constant 0 : i32
    return %arg0, %c0_i32, %c0_i32_0 : i32, i32, i32
  }
  func.func @transform_1(%arg0: i32) -> (i32, i32, i32) {
    %c0_i32 = arith.constant 0 : i32
    %c0_i32_0 = arith.constant 0 : i32
    %c0_i32_1 = arith.constant 0 : i32
    return %arg0, %c0_i32, %c0_i32_0 : i32, i32, i32
  }
  func.func @transform_2(%arg0: i32) -> (i32, i32, i32) {
    %c0_i32 = arith.constant 0 : i32
    %c0_i32_0 = arith.constant 0 : i32
    %c0_i32_1 = arith.constant 0 : i32
    return %arg0, %c0_i32, %c0_i32_0 : i32, i32, i32
  }
}

</mosaic_0001>

<llo_original>
// kernel: tpu_custom_call.1
$region0: #{tpu_custom_call.1}
  #allocation0 [shape = 'u32[]', space=smem, size = 0x4, offset = 0x4, fixed_abs, tag = 'smem constant byte address 0x4 - core index']
  #allocation1 [shape = 'u32[144,128]{1,0:T(1,128)}', space=vmem, size = 0x12000, scoped, tag = 'internal scratch']
  %s0 = inlined_call_operand.hbm [shape: f32[2,8,512], index: 0, kind: input, shape index: {}]
  %s1 = inlined_call_operand.hbm [shape: f32[2,512,512], index: 1, kind: input, shape index: {}]
  %s2 = inlined_call_operand.hbm [shape: f32[2,8,512], index: 2, kind: output, shape index: {}]
  %s3 = sld [smem:[#allocation0]]
  $region49: #{tpu_custom_call.1} parent=0
    _
  %s5 = ssub.s32 1, %s3
  %s6 = scalar_select 0, %s5, %s3
  $region1: #{tpu_custom_call.1} parent=0
    #allocation2 [shape = 'u8[32768]{0}', space=vmem, size = 0x8000, scoped, tag = 'input window, operand 0']
    #allocation3 [shape = 's32[2]{0}', space=sflag, size = 0x8, scoped, tag = 'scoped memory for tpu_custom_call.1']
    #allocation4 [shape = 's32[2]{0}', space=sflag, size = 0x8, scoped, tag = 'scoped memory for tpu_custom_call.1']
    #allocation5 [shape = 'u8[2097152]{0}', space=vmem, size = 0x200000, scoped, tag = 'input window, operand 1']
    #allocation6 [shape = 's32[2]{0}', space=sflag, size = 0x8, scoped, tag = 'scoped memory for tpu_custom_call.1']
    #allocation7 [shape = 'u8[32768]{0}', space=vmem, size = 0x8000, scoped, tag = 'output window, operand 0']
    %7 = vsyncpa [#allocation3], 0
    %s8 = scalar_lea.sflag [#allocation3], 1
    %9 = vsyncpa %s8, 0
    %10 = vsyncpa [#allocation6], 0
    %s11 = scalar_lea.sflag [#allocation6], 1
    %12 = vsyncpa %s11, 0
    %13 = vsyncpa [#allocation4], 0
    %s14 = scalar_lea.sflag [#allocation4], 1
    %15 = vsyncpa %s14, 0
    loop: start=0, step=1, limit=4
    $region2: #{tpu_custom_call.1} parent=1 // loop_pre_header
      _
    $region3: #{tpu_custom_call.1} parent=1 // loop_header
      %s17 = sphi 0, %s21
      %p18 = scmp.ge.s32.totalorder %s17, 4
      %s27 = sphi 0, %s29
      %s30 = sphi 0, %s27
      %s31 = sphi 0, %s30
      %s47 = sphi 0, %s31
      %s53 = sphi 0, %s55
      %s56 = sphi 0, %s53
      %s57 = sphi 0, %s56
      %s73 = sphi 0, %s57
      %s79 = sphi 0, %s81
      %s82 = sphi 0, %s79
      %s83 = sphi 0, %s82
      %s99 = sphi 0, %s83
    $region4: #{tpu_custom_call.1} parent=1 // loop_header_branch
      %20 = sbr.rel (%p18) target = $region8
    $region5: #{tpu_custom_call.1} parent=1 // loop_body
      %s22 = ssub.s32 %s17, 1
      %s23 = ssub.s32 %s17, 2
      %s24 = sadd.s32 %s17, 1
      %s25 = ssub.s32 %s17, %s24
      %p26 = scmp.eq.s32.totalorder %s25, 0
      %s28 = sadd.s32 %s27, 1
      %s29 = scalar_select %p26, %s27, %s28
      %p32 = pneg %p26
      %p33 = scmp.eq.s32.totalorder %s17, 1
      %p34 = por %p32, %p33
      %p35 = scmp.ne.s32.totalorder %s27, %s30
      %p36 = scmp.eq.s32.totalorder %s17, 0
      %p37 = por %p35, %p36
      %p38 = scmp.ne.s32.totalorder %s27, %s30
      %p39 = scmp.eq.s32.totalorder %s22, 1
      %p40 = por %p38, %p39
      %p41 = scmp.ne.s32.totalorder %s30, %s31
      %p42 = scmp.eq.s32.totalorder %s22, 0
      %p43 = por %p41, %p42
      %p44 = scmp.ne.s32.totalorder %s30, %s31
      %p45 = scmp.eq.s32.totalorder %s23, 1
      %p46 = por %p44, %p45
      %p48 = scmp.ne.s32.totalorder %s31, %s47
      %p49 = scmp.eq.s32.totalorder %s23, 0
      %p50 = por %p48, %p49
      %s51 = ssub.s32 %s17, %s24
      %p52 = scmp.eq.s32.totalorder %s51, 0
      %s54 = sadd.s32 %s53, 1
      %s55 = scalar_select %p52, %s53, %s54
      %p58 = pneg %p52
      %p59 = scmp.eq.s32.totalorder %s17, 1
      %p60 = por %p58, %p59
      %p61 = scmp.ne.s32.totalorder %s53, %s56
      %p62 = scmp.eq.s32.totalorder %s17, 0
      %p63 = por %p61, %p62
      %p64 = scmp.ne.s32.totalorder %s53, %s56
      %p65 = scmp.eq.s32.totalorder %s22, 1
      %p66 = por %p64, %p65
      %p67 = scmp.ne.s32.totalorder %s56, %s57
      %p68 = scmp.eq.s32.totalorder %s22, 0
      %p69 = por %p67, %p68
      %p70 = scmp.ne.s32.totalorder %s56, %s57
      %p71 = scmp.eq.s32.totalorder %s23, 1
      %p72 = por %p70, %p71
      %p74 = scmp.ne.s32.totalorder %s57, %s73
      %p75 = scmp.eq.s32.totalorder %s23, 0
      %p76 = por %p74, %p75
      %s77 = ssub.s32 %s17, %s24
      %p78 = scmp.eq.s32.totalorder %s77, 0
      %s80 = sadd.s32 %s79, 1
      %s81 = scalar_select %p78, %s79, %s80
      %p84 = pneg %p78
      %p85 = scmp.eq.s32.totalorder %s17, 1
      %p86 = por %p84, %p85
      %p87 = scmp.ne.s32.totalorder %s79, %s82
      %p88 = scmp.eq.s32.totalorder %s17, 0
      %p89 = por %p87, %p88
      %p90 = scmp.ne.s32.totalorder %s79, %s82
      %p91 = scmp.eq.s32.totalorder %s22, 1
      %p92 = por %p90, %p91
      %p93 = scmp.ne.s32.totalorder %s82, %s83
      %p94 = scmp.eq.s32.totalorder %s22, 0
      %p95 = por %p93, %p94
      %p96 = scmp.ne.s32.totalorder %s82, %s83
      %p97 = scmp.eq.s32.totalorder %s23, 1
      %p98 = por %p96, %p97
      %p100 = scmp.ne.s32.totalorder %s83, %s99
      %p101 = scmp.eq.s32.totalorder %s23, 0
      %p102 = por %p100, %p101
      %p103 = scmp.le.s32.totalorder 1, %s17
      %p104 = scmp.lt.s32.totalorder %s17, 3
      %p105 = pnand %p103, %p104
      %p106 = pneg %p105
      // Predicated region
      $region9: #{tpu_custom_call.1} parent=5 // pred_check
        _
      $region10: #{tpu_custom_call.1} parent=5 // pred_check_branch
        %108 = sbr.rel (%p105) target = $region12
      $region11: #{tpu_custom_call.1} parent=5 // pred_region
        %s109 = ssub.s32 %s17, 1
      $region12: #{tpu_custom_call.1} parent=5 // pred_fallthru
        _
      %p110 = scmp.lt.s32.totalorder %s17, 2
      // Predicated region
      $region13: #{tpu_custom_call.1} parent=5 // pred_check
        %p111 = pneg %p110
      $region14: #{tpu_custom_call.1} parent=5 // pred_check_branch
        %113 = sbr.rel (%p111) target = $region16
      $region15: #{tpu_custom_call.1} parent=5 // pred_region
        // Predicated region
        $region17: #{tpu_custom_call.1} parent=15 // pred_check
          %p114 = pneg %p37
        $region18: #{tpu_custom_call.1} parent=15 // pred_check_branch
          %116 = sbr.rel (%p114) target = $region20
        $region19: #{tpu_custom_call.1} parent=15 // pred_region
          %s117 = sand.u32 %s27, 1
          %s118 = scalar_lea.sflag [#allocation3], %s117
          %s119 = sand.u32 %s27, 1
          %s120 = smul.addr %s119, 32
          %s121 = scalar_lea.vmem [#allocation2], %s120
          %s123 = ssub.s32 512, 512
          %124 = vsyncadd %s118, %s123
          %s125 = smul.addr %s17, 4
          %s126 = smul.addr %s125, 128
          %s127 = scalar_lea.hbm %s0, %s126
          %s129 = sshll.u32 %s121, 4
          %s130 = int_to_ptr.vmem [resolvable:$true] %s129
          %132 = dma.hbm_to_vmem [thread:$0]  %s127, 512, %s130, %s118
        $region20: #{tpu_custom_call.1} parent=15 // pred_fallthru
          _
        // Predicated region
        $region21: #{tpu_custom_call.1} parent=15 // pred_check
          %p133 = pneg %p63
        $region22: #{tpu_custom_call.1} parent=15 // pred_check_branch
          %135 = sbr.rel (%p133) target = $region24
        $region23: #{tpu_custom_call.1} parent=15 // pred_region
          %s136 = sand.u32 %s53, 1
          %s137 = scalar_lea.sflag [#allocation6], %s136
          %s138 = sand.u32 %s53, 1
          %s139 = smul.addr %s138, 2048
          %s140 = scalar_lea.vmem [#allocation5], %s139
          %s142 = ssub.s32 32768, 32768
          %143 = vsyncadd %s137, %s142
          %s144 = smul.addr %s17, 256
          %s145 = smul.addr %s144, 128
          %s146 = scalar_lea.hbm %s1, %s145
          %s147 = sshll.u32 %s140, 4
          %s148 = int_to_ptr.vmem [resolvable:$true] %s147
          %153 = dma.hbm_to_vmem [thread:$0]  %s146, 32768, %s148, %s137, 512, 512, 32
        $region24: #{tpu_custom_call.1} parent=15 // pred_fallthru
          _
      $region16: #{tpu_custom_call.1} parent=5 // pred_fallthru
        _
      %p154 = scmp.le.s32.totalorder 1, %s17
      %p155 = scmp.lt.s32.totalorder %s17, 3
      %p156 = pnand %p154, %p155
      %p157 = pneg %p156
      // Predicated region
      $region25: #{tpu_custom_call.1} parent=5 // pred_check
        _
      $region26: #{tpu_custom_call.1} parent=5 // pred_check_branch
        %159 = sbr.rel (%p156) target = $region28
      $region27: #{tpu_custom_call.1} parent=5 // pred_region
        %s160 = ssub.s32 %s17, 1
        %s161 = sand.u32 %s30, 1
        %s162 = scalar_lea.sflag [#allocation3], %s161
        %s163 = sand.u32 %s30, 1
        %s164 = smul.addr %s163, 32
        %s165 = scalar_lea.vmem [#allocation2], %s164
        // Predicated region
        $region29: #{tpu_custom_call.1} parent=27 // pred_check
          %p166 = pneg %p43
        $region30: #{tpu_custom_call.1} parent=27 // pred_check_branch
          %168 = sbr.rel (%p166) target = $region32
        $region31: #{tpu_custom_call.1} parent=27 // pred_region
          %169 = dma.done %s162, 512
        $region32: #{tpu_custom_call.1} parent=27 // pred_fallthru
          _
        %s170 = sand.u32 %s56, 1
        %s171 = scalar_lea.sflag [#allocation6], %s170
        %s172 = sand.u32 %s56, 1
        %s173 = smul.addr %s172, 2048
        %s174 = scalar_lea.vmem [#allocation5], %s173
        // Predicated region
        $region33: #{tpu_custom_call.1} parent=27 // pred_check
          %p175 = pneg %p69
        $region34: #{tpu_custom_call.1} parent=27 // pred_check_branch
          %177 = sbr.rel (%p175) target = $region36
        $region35: #{tpu_custom_call.1} parent=27 // pred_region
          %178 = dma.done %s171, 32768
        $region36: #{tpu_custom_call.1} parent=27 // pred_fallthru
          _
        %s179 = sand.u32 %s30, 1
        %s180 = scalar_lea.sflag [#allocation3], %s179
        %s181 = sand.u32 %s30, 1
        %s182 = smul.addr %s181, 32
        %s183 = scalar_lea.vmem [#allocation2], %s182
        %p184 = pneg %p43
        %p185 = pneg %p40
        %s186 = sand.u32 %s56, 1
        %s187 = scalar_lea.sflag [#allocation6], %s186
        %s188 = sand.u32 %s56, 1
        %s189 = smul.addr %s188, 2048
        %s190 = scalar_lea.vmem [#allocation5], %s189
        %p191 = pneg %p69
        %p192 = pneg %p66
        %p193 = pneg %p95
        %p194 = pneg %p92
        %s195 = sand.u32 %s82, 1
        %s196 = scalar_lea.sflag [#allocation4], %s195
        %s197 = sand.u32 %s82, 1
        %s198 = smul.addr %s197, 32
        %s199 = scalar_lea.vmem [#allocation7], %s198
        %v200 = vld [vmem:[%s165] sm:$0xff]
        %v201 = vld [vmem:[%s165 + $0x8] sm:$0xff]
        %v202 = vld [vmem:[%s165 + $0x10] sm:$0xff]
        %v203 = vld [vmem:[%s165 + $0x18] sm:$0xff]
        %v204 = vlaneseq
        %v205 = vshrl.u32 %v204, 7
        %v206 = vlaneseq
        %v207 = vand.u32 %v206, 127
        %v208 = vadd.s32 %v207, 128
        %v209 = vadd.s32 %v207, 256
        %v210 = vadd.s32 %v207, 384
        %v211 = vadd.s32 %v205, 240
        %vm212 = vcmp.eq.s32.totalorder %v207, %v211
        %vm213 = vcmp.eq.s32.totalorder %v208, %v211
        %vm214 = vcmp.eq.s32.totalorder %v209, %v211
        %vm215 = vcmp.eq.s32.totalorder %v210, %v211
        %vm216 = vcmp.lt.s32.totalorder %v205, 4
        %vm217 = vmand %vm212, %vm216
        %vm218 = vmand %vm213, %vm216
        %vm219 = vmand %vm214, %vm216
        %vm220 = vmand %vm215, %vm216
        %v221 = vsel %vm217, 1.0, 0.0
        %v222 = vsel %vm218, 1.0, 0.0
        %v223 = vsel %vm219, 1.0, 0.0
        %v224 = vsel %vm220, 1.0, 0.0
        %v225 = vadd.f32 %v200, %v221
        %v226 = vadd.f32 %v201, %v222
        %v227 = vadd.f32 %v202, %v223
        %v228 = vadd.f32 %v203, %v224
        %v229 = vld [vmem:[%s174] sm:$0xff]
        %v230 = vld [vmem:[%s174 + $0x8] sm:$0xff]
        %v231 = vld [vmem:[%s174 + $0x10] sm:$0xff]
        %v232 = vld [vmem:[%s174 + $0x18] sm:$0xff]
        %v233 = vld [vmem:[%s174 + $0x20] sm:$0xff]
        %v234 = vld [vmem:[%s174 + $0x28] sm:$0xff]
        %v235 = vld [vmem:[%s174 + $0x30] sm:$0xff]
        %v236 = vld [vmem:[%s174 + $0x38] sm:$0xff]
        %v237 = vld [vmem:[%s174 + $0x40] sm:$0xff]
        %v238 = vld [vmem:[%s174 + $0x48] sm:$0xff]
        %v239 = vld [vmem:[%s174 + $0x50] sm:$0xff]
        %v240 = vld [vmem:[%s174 + $0x58] sm:$0xff]
        %v241 = vld [vmem:[%s174 + $0x60] sm:$0xff]
        %v242 = vld [vmem:[%s174 + $0x68] sm:$0xff]
        %v243 = vld [vmem:[%s174 + $0x70] sm:$0xff]
        %v244 = vld [vmem:[%s174 + $0x78] sm:$0xff]
        %v245 = vld [vmem:[%s174 + $0x80] sm:$0xff]
        %v246 = vld [vmem:[%s174 + $0x88] sm:$0xff]
        %v247 = vld [vmem:[%s174 + $0x90] sm:$0xff]
        %v248 = vld [vmem:[%s174 + $0x98] sm:$0xff]
        %v249 = vld [vmem:[%s174 + $0xa0] sm:$0xff]
        %v250 = vld [vmem:[%s174 + $0xa8] sm:$0xff]
        %v251 = vld [vmem:[%s174 + $0xb0] sm:$0xff]
        %v252 = vld [vmem:[%s174 + $0xb8] sm:$0xff]
        %v253 = vld [vmem:[%s174 + $0xc0] sm:$0xff]
        %v254 = vld [vmem:[%s174 + $0xc8] sm:$0xff]
        %v255 = vld [vmem:[%s174 + $0xd0] sm:$0xff]
        %v256 = vld [vmem:[%s174 + $0xd8] sm:$0xff]
        %v257 = vld [vmem:[%s174 + $0xe0] sm:$0xff]
        %v258 = vld [vmem:[%s174 + $0xe8] sm:$0xff]
        %v259 = vld [vmem:[%s174 + $0xf0] sm:$0xff]
        %v260 = vld [vmem:[%s174 + $0xf8] sm:$0xff]
        %v261 = vld [vmem:[%s174 + $0x100] sm:$0xff]
        %v262 = vld [vmem:[%s174 + $0x108] sm:$0xff]
        %v263 = vld [vmem:[%s174 + $0x110] sm:$0xff]
        %v264 = vld [vmem:[%s174 + $0x118] sm:$0xff]
        %v265 = vld [vmem:[%s174 + $0x120] sm:$0xff]
        %v266 = vld [vmem:[%s174 + $0x128] sm:$0xff]
        %v267 = vld [vmem:[%s174 + $0x130] sm:$0xff]
        %v268 = vld [vmem:[%s174 + $0x138] sm:$0xff]
        %v269 = vld [vmem:[%s174 + $0x140] sm:$0xff]
        %v270 = vld [vmem:[%s174 + $0x148] sm:$0xff]
        %v271 = vld [vmem:[%s174 + $0x150] sm:$0xff]
        %v272 = vld [vmem:[%s174 + $0x158] sm:$0xff]
        %v273 = vld [vmem:[%s174 + $0x160] sm:$0xff]
        %v274 = vld [vmem:[%s174 + $0x168] sm:$0xff]
        %v275 = vld [vmem:[%s174 + $0x170] sm:$0xff]
        %v276 = vld [vmem:[%s174 + $0x178] sm:$0xff]
        %v277 = vld [vmem:[%s174 + $0x180] sm:$0xff]
        %v278 = vld [vmem:[%s174 + $0x188] sm:$0xff]
        %v279 = vld [vmem:[%s174 + $0x190] sm:$0xff]
        %v280 = vld [vmem:[%s174 + $0x198] sm:$0xff]
        %v281 = vld [vmem:[%s174 + $0x1a0] sm:$0xff]
        %v282 = vld [vmem:[%s174 + $0x1a8] sm:$0xff]
        %v283 = vld [vmem:[%s174 + $0x1b0] sm:$0xff]
        %v284 = vld [vmem:[%s174 + $0x1b8] sm:$0xff]
        %v285 = vld [vmem:[%s174 + $0x1c0] sm:$0xff]
        %v286 = vld [vmem:[%s174 + $0x1c8] sm:$0xff]
        %v287 = vld [vmem:[%s174 + $0x1d0] sm:$0xff]
        %v288 = vld [vmem:[%s174 + $0x1d8] sm:$0xff]
        %v289 = vld [vmem:[%s174 + $0x1e0] sm:$0xff]
        %v290 = vld [vmem:[%s174 + $0x1e8] sm:$0xff]
        %v291 = vld [vmem:[%s174 + $0x1f0] sm:$0xff]
        %v292 = vld [vmem:[%s174 + $0x1f8] sm:$0xff]
        %v293 = vld [vmem:[%s174 + $0x200] sm:$0xff]
        %v294 = vld [vmem:[%s174 + $0x208] sm:$0xff]
        %v295 = vld [vmem:[%s174 + $0x210] sm:$0xff]
        %v296 = vld [vmem:[%s174 + $0x218] sm:$0xff]
        %v297 = vld [vmem:[%s174 + $0x220] sm:$0xff]
        %v298 = vld [vmem:[%s174 + $0x228] sm:$0xff]
        %v299 = vld [vmem:[%s174 + $0x230] sm:$0xff]
        %v300 = vld [vmem:[%s174 + $0x238] sm:$0xff]
        %v301 = vld [vmem:[%s174 + $0x240] sm:$0xff]
        %v302 = vld [vmem:[%s174 + $0x248] sm:$0xff]
        %v303 = vld [vmem:[%s174 + $0x250] sm:$0xff]
        %v304 = vld [vmem:[%s174 + $0x258] sm:$0xff]
        %v305 = vld [vmem:[%s174 + $0x260] sm:$0xff]
        %v306 = vld [vmem:[%s174 + $0x268] sm:$0xff]
        %v307 = vld [vmem:[%s174 + $0x270] sm:$0xff]
        %v308 = vld [vmem:[%s174 + $0x278] sm:$0xff]
        %v309 = vld [vmem:[%s174 + $0x280] sm:$0xff]
        %v310 = vld [vmem:[%s174 + $0x288] sm:$0xff]
        %v311 = vld [vmem:[%s174 + $0x290] sm:$0xff]
        %v312 = vld [vmem:[%s174 + $0x298] sm:$0xff]
        %v313 = vld [vmem:[%s174 + $0x2a0] sm:$0xff]
        %v314 = vld [vmem:[%s174 + $0x2a8] sm:$0xff]
        %v315 = vld [vmem:[%s174 + $0x2b0] sm:$0xff]
        %v316 = vld [vmem:[%s174 + $0x2b8] sm:$0xff]
        %v317 = vld [vmem:[%s174 + $0x2c0] sm:$0xff]
        %v318 = vld [vmem:[%s174 + $0x2c8] sm:$0xff]
        %v319 = vld [vmem:[%s174 + $0x2d0] sm:$0xff]
        %v320 = vld [vmem:[%s174 + $0x2d8] sm:$0xff]
        %v321 = vld [vmem:[%s174 + $0x2e0] sm:$0xff]
        %v322 = vld [vmem:[%s174 + $0x2e8] sm:$0xff]
        %v323 = vld [vmem:[%s174 + $0x2f0] sm:$0xff]
        %v324 = vld [vmem:[%s174 + $0x2f8] sm:$0xff]
        %v325 = vld [vmem:[%s174 + $0x300] sm:$0xff]
        %v326 = vld [vmem:[%s174 + $0x308] sm:$0xff]
        %v327 = vld [vmem:[%s174 + $0x310] sm:$0xff]
        %v328 = vld [vmem:[%s174 + $0x318] sm:$0xff]
        %v329 = vld [vmem:[%s174 + $0x320] sm:$0xff]
        %v330 = vld [vmem:[%s174 + $0x328] sm:$0xff]
        %v331 = vld [vmem:[%s174 + $0x330] sm:$0xff]
        %v332 = vld [vmem:[%s174 + $0x338] sm:$0xff]
        %v333 = vld [vmem:[%s174 + $0x340] sm:$0xff]
        %v334 = vld [vmem:[%s174 + $0x348] sm:$0xff]
        %v335 = vld [vmem:[%s174 + $0x350] sm:$0xff]
        %v336 = vld [vmem:[%s174 + $0x358] sm:$0xff]
        %v337 = vld [vmem:[%s174 + $0x360] sm:$0xff]
        %v338 = vld [vmem:[%s174 + $0x368] sm:$0xff]
        %v339 = vld [vmem:[%s174 + $0x370] sm:$0xff]
        %v340 = vld [vmem:[%s174 + $0x378] sm:$0xff]
        %v341 = vld [vmem:[%s174 + $0x380] sm:$0xff]
        %v342 = vld [vmem:[%s174 + $0x388] sm:$0xff]
        %v343 = vld [vmem:[%s174 + $0x390] sm:$0xff]
        %v344 = vld [vmem:[%s174 + $0x398] sm:$0xff]
        %v345 = vld [vmem:[%s174 + $0x3a0] sm:$0xff]
        %v346 = vld [vmem:[%s174 + $0x3a8] sm:$0xff]
        %v347 = vld [vmem:[%s174 + $0x3b0] sm:$0xff]
        %v348 = vld [vmem:[%s174 + $0x3b8] sm:$0xff]
        %v349 = vld [vmem:[%s174 + $0x3c0] sm:$0xff]
        %v350 = vld [vmem:[%s174 + $0x3c8] sm:$0xff]
        %v351 = vld [vmem:[%s174 + $0x3d0] sm:$0xff]
        %v352 = vld [vmem:[%s174 + $0x3d8] sm:$0xff]
        %v353 = vld [vmem:[%s174 + $0x3e0] sm:$0xff]
        %v354 = vld [vmem:[%s174 + $0x3e8] sm:$0xff]
        %v355 = vld [vmem:[%s174 + $0x3f0] sm:$0xff]
        %v356 = vld [vmem:[%s174 + $0x3f8] sm:$0xff]
        %v357 = vld [vmem:[%s174 + $0x400] sm:$0xff]
        %v358 = vld [vmem:[%s174 + $0x408] sm:$0xff]
        %v359 = vld [vmem:[%s174 + $0x410] sm:$0xff]
        %v360 = vld [vmem:[%s174 + $0x418] sm:$0xff]
        %v361 = vld [vmem:[%s174 + $0x420] sm:$0xff]
        %v362 = vld [vmem:[%s174 + $0x428] sm:$0xff]
        %v363 = vld [vmem:[%s174 + $0x430] sm:$0xff]
        %v364 = vld [vmem:[%s174 + $0x438] sm:$0xff]
        %v365 = vld [vmem:[%s174 + $0x440] sm:$0xff]
        %v366 = vld [vmem:[%s174 + $0x448] sm:$0xff]
        %v367 = vld [vmem:[%s174 + $0x450] sm:$0xff]
        %v368 = vld [vmem:[%s174 + $0x458] sm:$0xff]
        %v369 = vld [vmem:[%s174 + $0x460] sm:$0xff]
        %v370 = vld [vmem:[%s174 + $0x468] sm:$0xff]
        %v371 = vld [vmem:[%s174 + $0x470] sm:$0xff]
        %v372 = vld [vmem:[%s174 + $0x478] sm:$0xff]
        %v373 = vld [vmem:[%s174 + $0x480] sm:$0xff]
        %v374 = vld [vmem:[%s174 + $0x488] sm:$0xff]
        %v375 = vld [vmem:[%s174 + $0x490] sm:$0xff]
        %v376 = vld [vmem:[%s174 + $0x498] sm:$0xff]
        %v377 = vld [vmem:[%s174 + $0x4a0] sm:$0xff]
        %v378 = vld [vmem:[%s174 + $0x4a8] sm:$0xff]
        %v379 = vld [vmem:[%s174 + $0x4b0] sm:$0xff]
        %v380 = vld [vmem:[%s174 + $0x4b8] sm:$0xff]
        %v381 = vld [vmem:[%s174 + $0x4c0] sm:$0xff]
        %v382 = vld [vmem:[%s174 + $0x4c8] sm:$0xff]
        %v383 = vld [vmem:[%s174 + $0x4d0] sm:$0xff]
        %v384 = vld [vmem:[%s174 + $0x4d8] sm:$0xff]
        %v385 = vld [vmem:[%s174 + $0x4e0] sm:$0xff]
        %v386 = vld [vmem:[%s174 + $0x4e8] sm:$0xff]
        %v387 = vld [vmem:[%s174 + $0x4f0] sm:$0xff]
        %v388 = vld [vmem:[%s174 + $0x4f8] sm:$0xff]
        %v389 = vld [vmem:[%s174 + $0x500] sm:$0xff]
        %v390 = vld [vmem:[%s174 + $0x508] sm:$0xff]
        %v391 = vld [vmem:[%s174 + $0x510] sm:$0xff]
        %v392 = vld [vmem:[%s174 + $0x518] sm:$0xff]
        %v393 = vld [vmem:[%s174 + $0x520] sm:$0xff]
        %v394 = vld [vmem:[%s174 + $0x528] sm:$0xff]
        %v395 = vld [vmem:[%s174 + $0x530] sm:$0xff]
        %v396 = vld [vmem:[%s174 + $0x538] sm:$0xff]
        %v397 = vld [vmem:[%s174 + $0x540] sm:$0xff]
        %v398 = vld [vmem:[%s174 + $0x548] sm:$0xff]
        %v399 = vld [vmem:[%s174 + $0x550] sm:$0xff]
        %v400 = vld [vmem:[%s174 + $0x558] sm:$0xff]
        %v401 = vld [vmem:[%s174 + $0x560] sm:$0xff]
        %v402 = vld [vmem:[%s174 + $0x568] sm:$0xff]
        %v403 = vld [vmem:[%s174 + $0x570] sm:$0xff]
        %v404 = vld [vmem:[%s174 + $0x578] sm:$0xff]
        %v405 = vld [vmem:[%s174 + $0x580] sm:$0xff]
        %v406 = vld [vmem:[%s174 + $0x588] sm:$0xff]
        %v407 = vld [vmem:[%s174 + $0x590] sm:$0xff]
        %v408 = vld [vmem:[%s174 + $0x598] sm:$0xff]
        %v409 = vld [vmem:[%s174 + $0x5a0] sm:$0xff]
        %v410 = vld [vmem:[%s174 + $0x5a8] sm:$0xff]
        %v411 = vld [vmem:[%s174 + $0x5b0] sm:$0xff]
        %v412 = vld [vmem:[%s174 + $0x5b8] sm:$0xff]
        %v413 = vld [vmem:[%s174 + $0x5c0] sm:$0xff]
        %v414 = vld [vmem:[%s174 + $0x5c8] sm:$0xff]
        %v415 = vld [vmem:[%s174 + $0x5d0] sm:$0xff]
        %v416 = vld [vmem:[%s174 + $0x5d8] sm:$0xff]
        %v417 = vld [vmem:[%s174 + $0x5e0] sm:$0xff]
        %v418 = vld [vmem:[%s174 + $0x5e8] sm:$0xff]
        %v419 = vld [vmem:[%s174 + $0x5f0] sm:$0xff]
        %v420 = vld [vmem:[%s174 + $0x5f8] sm:$0xff]
        %v421 = vld [vmem:[%s174 + $0x600] sm:$0xff]
        %v422 = vld [vmem:[%s174 + $0x608] sm:$0xff]
        %v423 = vld [vmem:[%s174 + $0x610] sm:$0xff]
        %v424 = vld [vmem:[%s174 + $0x618] sm:$0xff]
        %v425 = vld [vmem:[%s174 + $0x620] sm:$0xff]
        %v426 = vld [vmem:[%s174 + $0x628] sm:$0xff]
        %v427 = vld [vmem:[%s174 + $0x630] sm:$0xff]
        %v428 = vld [vmem:[%s174 + $0x638] sm:$0xff]
        %v429 = vld [vmem:[%s174 + $0x640] sm:$0xff]
        %v430 = vld [vmem:[%s174 + $0x648] sm:$0xff]
        %v431 = vld [vmem:[%s174 + $0x650] sm:$0xff]
        %v432 = vld [vmem:[%s174 + $0x658] sm:$0xff]
        %v433 = vld [vmem:[%s174 + $0x660] sm:$0xff]
        %v434 = vld [vmem:[%s174 + $0x668] sm:$0xff]
        %v435 = vld [vmem:[%s174 + $0x670] sm:$0xff]
        %v436 = vld [vmem:[%s174 + $0x678] sm:$0xff]
        %v437 = vld [vmem:[%s174 + $0x680] sm:$0xff]
        %v438 = vld [vmem:[%s174 + $0x688] sm:$0xff]
        %v439 = vld [vmem:[%s174 + $0x690] sm:$0xff]
        %v440 = vld [vmem:[%s174 + $0x698] sm:$0xff]
        %v441 = vld [vmem:[%s174 + $0x6a0] sm:$0xff]
        %v442 = vld [vmem:[%s174 + $0x6a8] sm:$0xff]
        %v443 = vld [vmem:[%s174 + $0x6b0] sm:$0xff]
        %v444 = vld [vmem:[%s174 + $0x6b8] sm:$0xff]
        %v445 = vld [vmem:[%s174 + $0x6c0] sm:$0xff]
        %v446 = vld [vmem:[%s174 + $0x6c8] sm:$0xff]
        %v447 = vld [vmem:[%s174 + $0x6d0] sm:$0xff]
        %v448 = vld [vmem:[%s174 + $0x6d8] sm:$0xff]
        %v449 = vld [vmem:[%s174 + $0x6e0] sm:$0xff]
        %v450 = vld [vmem:[%s174 + $0x6e8] sm:$0xff]
        %v451 = vld [vmem:[%s174 + $0x6f0] sm:$0xff]
        %v452 = vld [vmem:[%s174 + $0x6f8] sm:$0xff]
        %v453 = vld [vmem:[%s174 + $0x700] sm:$0xff]
        %v454 = vld [vmem:[%s174 + $0x708] sm:$0xff]
        %v455 = vld [vmem:[%s174 + $0x710] sm:$0xff]
        %v456 = vld [vmem:[%s174 + $0x718] sm:$0xff]
        %v457 = vld [vmem:[%s174 + $0x720] sm:$0xff]
        %v458 = vld [vmem:[%s174 + $0x728] sm:$0xff]
        %v459 = vld [vmem:[%s174 + $0x730] sm:$0xff]
        %v460 = vld [vmem:[%s174 + $0x738] sm:$0xff]
        %v461 = vld [vmem:[%s174 + $0x740] sm:$0xff]
        %v462 = vld [vmem:[%s174 + $0x748] sm:$0xff]
        %v463 = vld [vmem:[%s174 + $0x750] sm:$0xff]
        %v464 = vld [vmem:[%s174 + $0x758] sm:$0xff]
        %v465 = vld [vmem:[%s174 + $0x760] sm:$0xff]
        %v466 = vld [vmem:[%s174 + $0x768] sm:$0xff]
        %v467 = vld [vmem:[%s174 + $0x770] sm:$0xff]
        %v468 = vld [vmem:[%s174 + $0x778] sm:$0xff]
        %v469 = vld [vmem:[%s174 + $0x780] sm:$0xff]
        %v470 = vld [vmem:[%s174 + $0x788] sm:$0xff]
        %v471 = vld [vmem:[%s174 + $0x790] sm:$0xff]
        %v472 = vld [vmem:[%s174 + $0x798] sm:$0xff]
        %v473 = vld [vmem:[%s174 + $0x7a0] sm:$0xff]
        %v474 = vld [vmem:[%s174 + $0x7a8] sm:$0xff]
        %v475 = vld [vmem:[%s174 + $0x7b0] sm:$0xff]
        %v476 = vld [vmem:[%s174 + $0x7b8] sm:$0xff]
        %v477 = vld [vmem:[%s174 + $0x7c0] sm:$0xff]
        %v478 = vld [vmem:[%s174 + $0x7c8] sm:$0xff]
        %v479 = vld [vmem:[%s174 + $0x7d0] sm:$0xff]
        %v480 = vld [vmem:[%s174 + $0x7d8] sm:$0xff]
        %v481 = vld [vmem:[%s174 + $0x7e0] sm:$0xff]
        %v482 = vld [vmem:[%s174 + $0x7e8] sm:$0xff]
        %v483 = vld [vmem:[%s174 + $0x7f0] sm:$0xff]
        %v484 = vld [vmem:[%s174 + $0x7f8] sm:$0xff]
        %485 = vmatprep.subr.mxu0 %v290
        %486 = vmatpush1.msra.mxu0 %v289
        %487 = vmatprep.subr.mxu0 %v286
        %488 = vmatpush1.msra.mxu0 %v285
        %489 = vmatprep.subr.mxu0 %v282
        %490 = vmatpush1.msra.mxu0 %v281
        %491 = vmatprep.subr.mxu0 %v278
        %492 = vmatpush1.msra.mxu0 %v277
        %493 = vmatprep.subr.mxu0 %v274
        %494 = vmatpush1.msra.mxu0 %v273
        %495 = vmatprep.subr.mxu0 %v270
        %496 = vmatpush1.msra.mxu0 %v269
        %497 = vmatprep.subr.mxu0 %v266
        %498 = vmatpush1.msra.mxu0 %v265
        %499 = vmatprep.subr.mxu0 %v262
        %500 = vmatpush1.msra.mxu0 %v261
        %501 = vmatprep.subr.mxu0 %v258
        %502 = vmatpush1.msra.mxu0 %v257
        %503 = vmatprep.subr.mxu0 %v254
        %504 = vmatpush1.msra.mxu0 %v253
        %505 = vmatprep.subr.mxu0 %v250
        %506 = vmatpush1.msra.mxu0 %v249
        %507 = vmatprep.subr.mxu0 %v246
        %508 = vmatpush1.msra.mxu0 %v245
        %509 = vmatprep.subr.mxu0 %v242
        %510 = vmatpush1.msra.mxu0 %v241
        %511 = vmatprep.subr.mxu0 %v238
        %512 = vmatpush1.msra.mxu0 %v237
        %513 = vmatprep.subr.mxu0 %v234
        %514 = vmatpush1.msra.mxu0 %v233
        %515 = vmatprep.subr.mxu0 %v230
        %516 = vmatpush1.msra.mxu0 %v229
        %517 = vmatprep.subr.mxu0 %v354
        %518 = vmatpush2.msra.mxu0 %v353
        %519 = vmatprep.subr.mxu0 %v350
        %520 = vmatpush2.msra.mxu0 %v349
        %521 = vmatprep.subr.mxu0 %v346
        %522 = vmatpush2.msra.mxu0 %v345
        %523 = vmatprep.subr.mxu0 %v342
        %524 = vmatpush2.msra.mxu0 %v341
        %525 = vmatprep.subr.mxu0 %v338
        %526 = vmatpush2.msra.mxu0 %v337
        %527 = vmatprep.subr.mxu0 %v334
        %528 = vmatpush2.msra.mxu0 %v333
        %529 = vmatprep.subr.mxu0 %v330
        %530 = vmatpush2.msra.mxu0 %v329
        %531 = vmatprep.subr.mxu0 %v326
        %532 = vmatpush2.msra.mxu0 %v325
        %533 = vmatprep.subr.mxu0 %v322
        %534 = vmatpush2.msra.mxu0 %v321
        %535 = vmatprep.subr.mxu0 %v318
        %536 = vmatpush2.msra.mxu0 %v317
        %537 = vmatprep.subr.mxu0 %v314
        %538 = vmatpush2.msra.mxu0 %v313
        %539 = vmatprep.subr.mxu0 %v310
        %540 = vmatpush2.msra.mxu0 %v309
        %541 = vmatprep.subr.mxu0 %v306
        %542 = vmatpush2.msra.mxu0 %v305
        %543 = vmatprep.subr.mxu0 %v302
        %544 = vmatpush2.msra.mxu0 %v301
        %545 = vmatprep.subr.mxu0 %v298
        %546 = vmatpush2.msra.mxu0 %v297
        %547 = vmatprep.subr.mxu0 %v294
        %548 = vmatpush2.msra.mxu0 %v293
        %549 = vmatprep.mubr.f32.mxu0 %v201
        %550 = vmatmul.mubr.f32.gmra.mxu0 %v200
        %v551 = vpop.f32.mrf.mxu0
        %v552 = vadd.f32 0.0, %v551
        %v553 = vpop.f32.mrf.mxu0
        %v554 = vadd.f32 0.0, %v553
        %555 = vdwg.mxu0
        %556 = vmatprep.subr.mxu0 %v418
        %557 = vmatpush1.msra.mxu0 %v417
        %558 = vmatprep.subr.mxu0 %v414
        %559 = vmatpush1.msra.mxu0 %v413
        %560 = vmatprep.subr.mxu0 %v410
        %561 = vmatpush1.msra.mxu0 %v409
        %562 = vmatprep.subr.mxu0 %v406
        %563 = vmatpush1.msra.mxu0 %v405
        %564 = vmatprep.subr.mxu0 %v402
        %565 = vmatpush1.msra.mxu0 %v401
        %566 = vmatprep.subr.mxu0 %v398
        %567 = vmatpush1.msra.mxu0 %v397
        %568 = vmatprep.subr.mxu0 %v394
        %569 = vmatpush1.msra.mxu0 %v393
        %570 = vmatprep.subr.mxu0 %v390
        %571 = vmatpush1.msra.mxu0 %v389
        %572 = vmatprep.subr.mxu0 %v386
        %573 = vmatpush1.msra.mxu0 %v385
        %574 = vmatprep.subr.mxu0 %v382
        %575 = vmatpush1.msra.mxu0 %v381
        %576 = vmatprep.subr.mxu0 %v378
        %577 = vmatpush1.msra.mxu0 %v377
        %578 = vmatprep.subr.mxu0 %v374
        %579 = vmatpush1.msra.mxu0 %v373
        %580 = vmatprep.subr.mxu0 %v370
        %581 = vmatpush1.msra.mxu0 %v369
        %582 = vmatprep.subr.mxu0 %v366
        %583 = vmatpush1.msra.mxu0 %v365
        %584 = vmatprep.subr.mxu0 %v362
        %585 = vmatpush1.msra.mxu0 %v361
        %586 = vmatprep.subr.mxu0 %v358
        %587 = vmatpush1.msra.mxu0 %v357
        %588 = vmatprep.subr.mxu0 %v482
        %589 = vmatpush2.msra.mxu0 %v481
        %590 = vmatprep.subr.mxu0 %v478
        %591 = vmatpush2.msra.mxu0 %v477
        %592 = vmatprep.subr.mxu0 %v474
        %593 = vmatpush2.msra.mxu0 %v473
        %594 = vmatprep.subr.mxu0 %v470
        %595 = vmatpush2.msra.mxu0 %v469
        %596 = vmatprep.subr.mxu0 %v466
        %597 = vmatpush2.msra.mxu0 %v465
        %598 = vmatprep.subr.mxu0 %v462
        %599 = vmatpush2.msra.mxu0 %v461
        %600 = vmatprep.subr.mxu0 %v458
        %601 = vmatpush2.msra.mxu0 %v457
        %602 = vmatprep.subr.mxu0 %v454
        %603 = vmatpush2.msra.mxu0 %v453
        %604 = vmatprep.subr.mxu0 %v450
        %605 = vmatpush2.msra.mxu0 %v449
        %606 = vmatprep.subr.mxu0 %v446
        %607 = vmatpush2.msra.mxu0 %v445
        %608 = vmatprep.subr.mxu0 %v442
        %609 = vmatpush2.msra.mxu0 %v441
        %610 = vmatprep.subr.mxu0 %v438
        %611 = vmatpush2.msra.mxu0 %v437
        %612 = vmatprep.subr.mxu0 %v434
        %613 = vmatpush2.msra.mxu0 %v433
        %614 = vmatprep.subr.mxu0 %v430
        %615 = vmatpush2.msra.mxu0 %v429
        %616 = vmatprep.subr.mxu0 %v426
        %617 = vmatpush2.msra.mxu0 %v425
        %618 = vmatprep.subr.mxu0 %v422
        %619 = vmatpush2.msra.mxu0 %v421
        %620 = vmatprep.mubr.f32.mxu0 %v203
        %621 = vmatmul.mubr.f32.gmra.mxu0 %v202
        %v622 = vpop.f32.mrf.mxu0
        %v623 = vadd.f32 %v552, %v622
        %v624 = vpop.f32.mrf.mxu0
        %v625 = vadd.f32 %v554, %v624
        %626 = vdwg.mxu0
        %627 = vmatprep.subr.mxu0 %v292
        %628 = vmatpush1.msra.mxu0 %v291
        %629 = vmatprep.subr.mxu0 %v288
        %630 = vmatpush1.msra.mxu0 %v287
        %631 = vmatprep.subr.mxu0 %v284
        %632 = vmatpush1.msra.mxu0 %v283
        %633 = vmatprep.subr.mxu0 %v280
        %634 = vmatpush1.msra.mxu0 %v279
        %635 = vmatprep.subr.mxu0 %v276
        %636 = vmatpush1.msra.mxu0 %v275
        %637 = vmatprep.subr.mxu0 %v272
        %638 = vmatpush1.msra.mxu0 %v271
        %639 = vmatprep.subr.mxu0 %v268
        %640 = vmatpush1.msra.mxu0 %v267
        %641 = vmatprep.subr.mxu0 %v264
        %642 = vmatpush1.msra.mxu0 %v263
        %643 = vmatprep.subr.mxu0 %v260
        %644 = vmatpush1.msra.mxu0 %v259
        %645 = vmatprep.subr.mxu0 %v256
        %646 = vmatpush1.msra.mxu0 %v255
        %647 = vmatprep.subr.mxu0 %v252
        %648 = vmatpush1.msra.mxu0 %v251
        %649 = vmatprep.subr.mxu0 %v248
        %650 = vmatpush1.msra.mxu0 %v247
        %651 = vmatprep.subr.mxu0 %v244
        %652 = vmatpush1.msra.mxu0 %v243
        %653 = vmatprep.subr.mxu0 %v240
        %654 = vmatpush1.msra.mxu0 %v239
        %655 = vmatprep.subr.mxu0 %v236
        %656 = vmatpush1.msra.mxu0 %v235
        %657 = vmatprep.subr.mxu0 %v232
        %658 = vmatpush1.msra.mxu0 %v231
        %659 = vmatprep.subr.mxu0 %v356
        %660 = vmatpush2.msra.mxu0 %v355
        %661 = vmatprep.subr.mxu0 %v352
        %662 = vmatpush2.msra.mxu0 %v351
        %663 = vmatprep.subr.mxu0 %v348
        %664 = vmatpush2.msra.mxu0 %v347
        %665 = vmatprep.subr.mxu0 %v344
        %666 = vmatpush2.msra.mxu0 %v343
        %667 = vmatprep.subr.mxu0 %v340
        %668 = vmatpush2.msra.mxu0 %v339
        %669 = vmatprep.subr.mxu0 %v336
        %670 = vmatpush2.msra.mxu0 %v335
        %671 = vmatprep.subr.mxu0 %v332
        %672 = vmatpush2.msra.mxu0 %v331
        %673 = vmatprep.subr.mxu0 %v328
        %674 = vmatpush2.msra.mxu0 %v327
        %675 = vmatprep.subr.mxu0 %v324
        %676 = vmatpush2.msra.mxu0 %v323
        %677 = vmatprep.subr.mxu0 %v320
        %678 = vmatpush2.msra.mxu0 %v319
        %679 = vmatprep.subr.mxu0 %v316
        %680 = vmatpush2.msra.mxu0 %v315
        %681 = vmatprep.subr.mxu0 %v312
        %682 = vmatpush2.msra.mxu0 %v311
        %683 = vmatprep.subr.mxu0 %v308
        %684 = vmatpush2.msra.mxu0 %v307
        %685 = vmatprep.subr.mxu0 %v304
        %686 = vmatpush2.msra.mxu0 %v303
        %687 = vmatprep.subr.mxu0 %v300
        %688 = vmatpush2.msra.mxu0 %v299
        %689 = vmatprep.subr.mxu0 %v296
        %690 = vmatpush2.msra.mxu0 %v295
        %691 = vmatprep.mubr.f32.mxu0 %v201
        %692 = vmatmul.mubr.f32.gmra.mxu0 %v200
        %v693 = vpop.f32.mrf.mxu0
        %v694 = vadd.f32 0.0, %v693
        %v695 = vpop.f32.mrf.mxu0
        %v696 = vadd.f32 0.0, %v695
        %697 = vdwg.mxu0
        %698 = vmatprep.subr.mxu0 %v420
        %699 = vmatpush1.msra.mxu0 %v419
        %700 = vmatprep.subr.mxu0 %v416
        %701 = vmatpush1.msra.mxu0 %v415
        %702 = vmatprep.subr.mxu0 %v412
        %703 = vmatpush1.msra.mxu0 %v411
        %704 = vmatprep.subr.mxu0 %v408
        %705 = vmatpush1.msra.mxu0 %v407
        %706 = vmatprep.subr.mxu0 %v404
        %707 = vmatpush1.msra.mxu0 %v403
        %708 = vmatprep.subr.mxu0 %v400
        %709 = vmatpush1.msra.mxu0 %v399
        %710 = vmatprep.subr.mxu0 %v396
        %711 = vmatpush1.msra.mxu0 %v395
        %712 = vmatprep.subr.mxu0 %v392
        %713 = vmatpush1.msra.mxu0 %v391
        %714 = vmatprep.subr.mxu0 %v388
        %715 = vmatpush1.msra.mxu0 %v387
        %716 = vmatprep.subr.mxu0 %v384
        %717 = vmatpush1.msra.mxu0 %v383
        %718 = vmatprep.subr.mxu0 %v380
        %719 = vmatpush1.msra.mxu0 %v379
        %720 = vmatprep.subr.mxu0 %v376
        %721 = vmatpush1.msra.mxu0 %v375
        %722 = vmatprep.subr.mxu0 %v372
        %723 = vmatpush1.msra.mxu0 %v371
        %724 = vmatprep.subr.mxu0 %v368
        %725 = vmatpush1.msra.mxu0 %v367
        %726 = vmatprep.subr.mxu0 %v364
        %727 = vmatpush1.msra.mxu0 %v363
        %728 = vmatprep.subr.mxu0 %v360
        %729 = vmatpush1.msra.mxu0 %v359
        %730 = vmatprep.subr.mxu0 %v484
        %731 = vmatpush2.msra.mxu0 %v483
        %732 = vmatprep.subr.mxu0 %v480
        %733 = vmatpush2.msra.mxu0 %v479
        %734 = vmatprep.subr.mxu0 %v476
        %735 = vmatpush2.msra.mxu0 %v475
        %736 = vmatprep.subr.mxu0 %v472
        %737 = vmatpush2.msra.mxu0 %v471
        %738 = vmatprep.subr.mxu0 %v468
        %739 = vmatpush2.msra.mxu0 %v467
        %740 = vmatprep.subr.mxu0 %v464
        %741 = vmatpush2.msra.mxu0 %v463
        %742 = vmatprep.subr.mxu0 %v460
        %743 = vmatpush2.msra.mxu0 %v459
        %744 = vmatprep.subr.mxu0 %v456
        %745 = vmatpush2.msra.mxu0 %v455
        %746 = vmatprep.subr.mxu0 %v452
        %747 = vmatpush2.msra.mxu0 %v451
        %748 = vmatprep.subr.mxu0 %v448
        %749 = vmatpush2.msra.mxu0 %v447
        %750 = vmatprep.subr.mxu0 %v444
        %751 = vmatpush2.msra.mxu0 %v443
        %752 = vmatprep.subr.mxu0 %v440
        %753 = vmatpush2.msra.mxu0 %v439
        %754 = vmatprep.subr.mxu0 %v436
        %755 = vmatpush2.msra.mxu0 %v435
        %756 = vmatprep.subr.mxu0 %v432
        %757 = vmatpush2.msra.mxu0 %v431
        %758 = vmatprep.subr.mxu0 %v428
        %759 = vmatpush2.msra.mxu0 %v427
        %760 = vmatprep.subr.mxu0 %v424
        %761 = vmatpush2.msra.mxu0 %v423
        %762 = vmatprep.mubr.f32.mxu0 %v203
        %763 = vmatmul.mubr.f32.gmra.mxu0 %v202
        %v764 = vpop.f32.mrf.mxu0
        %v765 = vadd.f32 %v694, %v764
        %v766 = vpop.f32.mrf.mxu0
        %v767 = vadd.f32 %v696, %v766
        %768 = vdwg.mxu0
        %v769 = vmul.f32 %v623, 0.5
        %v770 = vmul.f32 %v625, 0.5
        %v771 = vmul.f32 %v765, 0.5
        %v772 = vmul.f32 %v767, 0.5
        %v773 = vadd.f32 %v225, %v769
        %v774 = vadd.f32 %v226, %v770
        %v775 = vadd.f32 %v227, %v771
        %v776 = vadd.f32 %v228, %v772
        %777 = vmatprep.subr.mxu0 %v290
        %778 = vmatpush1.msra.mxu0 %v289
        %779 = vmatprep.subr.mxu0 %v286
        %780 = vmatpush1.msra.mxu0 %v285
        %781 = vmatprep.subr.mxu0 %v282
        %782 = vmatpush1.msra.mxu0 %v281
        %783 = vmatprep.subr.mxu0 %v278
        %784 = vmatpush1.msra.mxu0 %v277
        %785 = vmatprep.subr.mxu0 %v274
        %786 = vmatpush1.msra.mxu0 %v273
        %787 = vmatprep.subr.mxu0 %v270
        %788 = vmatpush1.msra.mxu0 %v269
        %789 = vmatprep.subr.mxu0 %v266
        %790 = vmatpush1.msra.mxu0 %v265
        %791 = vmatprep.subr.mxu0 %v262
        %792 = vmatpush1.msra.mxu0 %v261
        %793 = vmatprep.subr.mxu0 %v258
        %794 = vmatpush1.msra.mxu0 %v257
        %795 = vmatprep.subr.mxu0 %v254
        %796 = vmatpush1.msra.mxu0 %v253
        %797 = vmatprep.subr.mxu0 %v250
        %798 = vmatpush1.msra.mxu0 %v249
        %799 = vmatprep.subr.mxu0 %v246
        %800 = vmatpush1.msra.mxu0 %v245
        %801 = vmatprep.subr.mxu0 %v242
        %802 = vmatpush1.msra.mxu0 %v241
        %803 = vmatprep.subr.mxu0 %v238
        %804 = vmatpush1.msra.mxu0 %v237
        %805 = vmatprep.subr.mxu0 %v234
        %806 = vmatpush1.msra.mxu0 %v233
        %807 = vmatprep.subr.mxu0 %v230
        %808 = vmatpush1.msra.mxu0 %v229
        %809 = vmatprep.subr.mxu0 %v354
        %810 = vmatpush2.msra.mxu0 %v353
        %811 = vmatprep.subr.mxu0 %v350
        %812 = vmatpush2.msra.mxu0 %v349
        %813 = vmatprep.subr.mxu0 %v346
        %814 = vmatpush2.msra.mxu0 %v345
        %815 = vmatprep.subr.mxu0 %v342
        %816 = vmatpush2.msra.mxu0 %v341
        %817 = vmatprep.subr.mxu0 %v338
        %818 = vmatpush2.msra.mxu0 %v337
        %819 = vmatprep.subr.mxu0 %v334
        %820 = vmatpush2.msra.mxu0 %v333
        %821 = vmatprep.subr.mxu0 %v330
        %822 = vmatpush2.msra.mxu0 %v329
        %823 = vmatprep.subr.mxu0 %v326
        %824 = vmatpush2.msra.mxu0 %v325
        %825 = vmatprep.subr.mxu0 %v322
        %826 = vmatpush2.msra.mxu0 %v321
        %827 = vmatprep.subr.mxu0 %v318
        %828 = vmatpush2.msra.mxu0 %v317
        %829 = vmatprep.subr.mxu0 %v314
        %830 = vmatpush2.msra.mxu0 %v313
        %831 = vmatprep.subr.mxu0 %v310
        %832 = vmatpush2.msra.mxu0 %v309
        %833 = vmatprep.subr.mxu0 %v306
        %834 = vmatpush2.msra.mxu0 %v305
        %835 = vmatprep.subr.mxu0 %v302
        %836 = vmatpush2.msra.mxu0 %v301
        %837 = vmatprep.subr.mxu0 %v298
        %838 = vmatpush2.msra.mxu0 %v297
        %839 = vmatprep.subr.mxu0 %v294
        %840 = vmatpush2.msra.mxu0 %v293
        %841 = vmatprep.mubr.f32.mxu0 %v770
        %842 = vmatmul.mubr.f32.gmra.mxu0 %v769
        %v843 = vpop.f32.mrf.mxu0
        %v844 = vadd.f32 0.0, %v843
        %v845 = vpop.f32.mrf.mxu0
        %v846 = vadd.f32 0.0, %v845
        %847 = vdwg.mxu0
        %848 = vmatprep.subr.mxu0 %v418
        %849 = vmatpush1.msra.mxu0 %v417
        %850 = vmatprep.subr.mxu0 %v414
        %851 = vmatpush1.msra.mxu0 %v413
        %852 = vmatprep.subr.mxu0 %v410
        %853 = vmatpush1.msra.mxu0 %v409
        %854 = vmatprep.subr.mxu0 %v406
        %855 = vmatpush1.msra.mxu0 %v405
        %856 = vmatprep.subr.mxu0 %v402
        %857 = vmatpush1.msra.mxu0 %v401
        %858 = vmatprep.subr.mxu0 %v398
        %859 = vmatpush1.msra.mxu0 %v397
        %860 = vmatprep.subr.mxu0 %v394
        %861 = vmatpush1.msra.mxu0 %v393
        %862 = vmatprep.subr.mxu0 %v390
        %863 = vmatpush1.msra.mxu0 %v389
        %864 = vmatprep.subr.mxu0 %v386
        %865 = vmatpush1.msra.mxu0 %v385
        %866 = vmatprep.subr.mxu0 %v382
        %867 = vmatpush1.msra.mxu0 %v381
        %868 = vmatprep.subr.mxu0 %v378
        %869 = vmatpush1.msra.mxu0 %v377
        %870 = vmatprep.subr.mxu0 %v374
        %871 = vmatpush1.msra.mxu0 %v373
        %872 = vmatprep.subr.mxu0 %v370
        %873 = vmatpush1.msra.mxu0 %v369
        %874 = vmatprep.subr.mxu0 %v366
        %875 = vmatpush1.msra.mxu0 %v365
        %876 = vmatprep.subr.mxu0 %v362
        %877 = vmatpush1.msra.mxu0 %v361
        %878 = vmatprep.subr.mxu0 %v358
        %879 = vmatpush1.msra.mxu0 %v357
        %880 = vmatprep.subr.mxu0 %v482
        %881 = vmatpush2.msra.mxu0 %v481
        %882 = vmatprep.subr.mxu0 %v478
        %883 = vmatpush2.msra.mxu0 %v477
        %884 = vmatprep.subr.mxu0 %v474
        %885 = vmatpush2.msra.mxu0 %v473
        %886 = vmatprep.subr.mxu0 %v470
        %887 = vmatpush2.msra.mxu0 %v469
        %888 = vmatprep.subr.mxu0 %v466
        %889 = vmatpush2.msra.mxu0 %v465
        %890 = vmatprep.subr.mxu0 %v462
        %891 = vmatpush2.msra.mxu0 %v461
        %892 = vmatprep.subr.mxu0 %v458
        %893 = vmatpush2.msra.mxu0 %v457
        %894 = vmatprep.subr.mxu0 %v454
        %895 = vmatpush2.msra.mxu0 %v453
        %896 = vmatprep.subr.mxu0 %v450
        %897 = vmatpush2.msra.mxu0 %v449
        %898 = vmatprep.subr.mxu0 %v446
        %899 = vmatpush2.msra.mxu0 %v445
        %900 = vmatprep.subr.mxu0 %v442
        %901 = vmatpush2.msra.mxu0 %v441
        %902 = vmatprep.subr.mxu0 %v438
        %903 = vmatpush2.msra.mxu0 %v437
        %904 = vmatprep.subr.mxu0 %v434
        %905 = vmatpush2.msra.mxu0 %v433
        %906 = vmatprep.subr.mxu0 %v430
        %907 = vmatpush2.msra.mxu0 %v429
        %908 = vmatprep.subr.mxu0 %v426
        %909 = vmatpush2.msra.mxu0 %v425
        %910 = vmatprep.subr.mxu0 %v422
        %911 = vmatpush2.msra.mxu0 %v421
        %912 = vmatprep.mubr.f32.mxu0 %v772
        %913 = vmatmul.mubr.f32.gmra.mxu0 %v771
        %v914 = vpop.f32.mrf.mxu0
        %v915 = vadd.f32 %v844, %v914
        %v916 = vpop.f32.mrf.mxu0
        %v917 = vadd.f32 %v846, %v916
        %918 = vdwg.mxu0
        %919 = vmatprep.subr.mxu0 %v292
        %920 = vmatpush1.msra.mxu0 %v291
        %921 = vmatprep.subr.mxu0 %v288
        %922 = vmatpush1.msra.mxu0 %v287
        %923 = vmatprep.subr.mxu0 %v284
        %924 = vmatpush1.msra.mxu0 %v283
        %925 = vmatprep.subr.mxu0 %v280
        %926 = vmatpush1.msra.mxu0 %v279
        %927 = vmatprep.subr.mxu0 %v276
        %928 = vmatpush1.msra.mxu0 %v275
        %929 = vmatprep.subr.mxu0 %v272
        %930 = vmatpush1.msra.mxu0 %v271
        %931 = vmatprep.subr.mxu0 %v268
        %932 = vmatpush1.msra.mxu0 %v267
        %933 = vmatprep.subr.mxu0 %v264
        %934 = vmatpush1.msra.mxu0 %v263
        %935 = vmatprep.subr.mxu0 %v260
        %936 = vmatpush1.msra.mxu0 %v259
        %937 = vmatprep.subr.mxu0 %v256
        %938 = vmatpush1.msra.mxu0 %v255
        %939 = vmatprep.subr.mxu0 %v252
        %940 = vmatpush1.msra.mxu0 %v251
        %941 = vmatprep.subr.mxu0 %v248
        %942 = vmatpush1.msra.mxu0 %v247
        %943 = vmatprep.subr.mxu0 %v244
        %944 = vmatpush1.msra.mxu0 %v243
        %945 = vmatprep.subr.mxu0 %v240
        %946 = vmatpush1.msra.mxu0 %v239
        %947 = vmatprep.subr.mxu0 %v236
        %948 = vmatpush1.msra.mxu0 %v235
        %949 = vmatprep.subr.mxu0 %v232
        %950 = vmatpush1.msra.mxu0 %v231
        %951 = vmatprep.subr.mxu0 %v356
        %952 = vmatpush2.msra.mxu0 %v355
        %953 = vmatprep.subr.mxu0 %v352
        %954 = vmatpush2.msra.mxu0 %v351
        %955 = vmatprep.subr.mxu0 %v348
        %956 = vmatpush2.msra.mxu0 %v347
        %957 = vmatprep.subr.mxu0 %v344
        %958 = vmatpush2.msra.mxu0 %v343
        %959 = vmatprep.subr.mxu0 %v340
        %960 = vmatpush2.msra.mxu0 %v339
        %961 = vmatprep.subr.mxu0 %v336
        %962 = vmatpush2.msra.mxu0 %v335
        %963 = vmatprep.subr.mxu0 %v332
        %964 = vmatpush2.msra.mxu0 %v331
        %965 = vmatprep.subr.mxu0 %v328
        %966 = vmatpush2.msra.mxu0 %v327
        %967 = vmatprep.subr.mxu0 %v324
        %968 = vmatpush2.msra.mxu0 %v323
        %969 = vmatprep.subr.mxu0 %v320
        %970 = vmatpush2.msra.mxu0 %v319
        %971 = vmatprep.subr.mxu0 %v316
        %972 = vmatpush2.msra.mxu0 %v315
        %973 = vmatprep.subr.mxu0 %v312
        %974 = vmatpush2.msra.mxu0 %v311
        %975 = vmatprep.subr.mxu0 %v308
        %976 = vmatpush2.msra.mxu0 %v307
        %977 = vmatprep.subr.mxu0 %v304
        %978 = vmatpush2.msra.mxu0 %v303
        %979 = vmatprep.subr.mxu0 %v300
        %980 = vmatpush2.msra.mxu0 %v299
        %981 = vmatprep.subr.mxu0 %v296
        %982 = vmatpush2.msra.mxu0 %v295
        %983 = vmatprep.mubr.f32.mxu0 %v770
        %984 = vmatmul.mubr.f32.gmra.mxu0 %v769
        %v985 = vpop.f32.mrf.mxu0
        %v986 = vadd.f32 0.0, %v985
        %v987 = vpop.f32.mrf.mxu0
        %v988 = vadd.f32 0.0, %v987
        %989 = vdwg.mxu0
        %990 = vmatprep.subr.mxu0 %v420
        %991 = vmatpush1.msra.mxu0 %v419
        %992 = vmatprep.subr.mxu0 %v416
        %993 = vmatpush1.msra.mxu0 %v415
        %994 = vmatprep.subr.mxu0 %v412
        %995 = vmatpush1.msra.mxu0 %v411
        %996 = vmatprep.subr.mxu0 %v408
        %997 = vmatpush1.msra.mxu0 %v407
        %998 = vmatprep.subr.mxu0 %v404
        %999 = vmatpush1.msra.mxu0 %v403
        %1000 = vmatprep.subr.mxu0 %v400
        %1001 = vmatpush1.msra.mxu0 %v399
        %1002 = vmatprep.subr.mxu0 %v396
        %1003 = vmatpush1.msra.mxu0 %v395
        %1004 = vmatprep.subr.mxu0 %v392
        %1005 = vmatpush1.msra.mxu0 %v391
        %1006 = vmatprep.subr.mxu0 %v388
        %1007 = vmatpush1.msra.mxu0 %v387
        %1008 = vmatprep.subr.mxu0 %v384
        %1009 = vmatpush1.msra.mxu0 %v383
        %1010 = vmatprep.subr.mxu0 %v380
        %1011 = vmatpush1.msra.mxu0 %v379
        %1012 = vmatprep.subr.mxu0 %v376
        %1013 = vmatpush1.msra.mxu0 %v375
        %1014 = vmatprep.subr.mxu0 %v372
        %1015 = vmatpush1.msra.mxu0 %v371
        %1016 = vmatprep.subr.mxu0 %v368
        %1017 = vmatpush1.msra.mxu0 %v367
        %1018 = vmatprep.subr.mxu0 %v364
        %1019 = vmatpush1.msra.mxu0 %v363
        %1020 = vmatprep.subr.mxu0 %v360
        %1021 = vmatpush1.msra.mxu0 %v359
        %1022 = vmatprep.subr.mxu0 %v484
        %1023 = vmatpush2.msra.mxu0 %v483
        %1024 = vmatprep.subr.mxu0 %v480
        %1025 = vmatpush2.msra.mxu0 %v479
        %1026 = vmatprep.subr.mxu0 %v476
        %1027 = vmatpush2.msra.mxu0 %v475
        %1028 = vmatprep.subr.mxu0 %v472
        %1029 = vmatpush2.msra.mxu0 %v471
        %1030 = vmatprep.subr.mxu0 %v468
        %1031 = vmatpush2.msra.mxu0 %v467
        %1032 = vmatprep.subr.mxu0 %v464
        %1033 = vmatpush2.msra.mxu0 %v463
        %1034 = vmatprep.subr.mxu0 %v460
        %1035 = vmatpush2.msra.mxu0 %v459
        %1036 = vmatprep.subr.mxu0 %v456
        %1037 = vmatpush2.msra.mxu0 %v455
        %1038 = vmatprep.subr.mxu0 %v452
        %1039 = vmatpush2.msra.mxu0 %v451
        %1040 = vmatprep.subr.mxu0 %v448
        %1041 = vmatpush2.msra.mxu0 %v447
        %1042 = vmatprep.subr.mxu0 %v444
        %1043 = vmatpush2.msra.mxu0 %v443
        %1044 = vmatprep.subr.mxu0 %v440
        %1045 = vmatpush2.msra.mxu0 %v439
        %1046 = vmatprep.subr.mxu0 %v436
        %1047 = vmatpush2.msra.mxu0 %v435
        %1048 = vmatprep.subr.mxu0 %v432
        %1049 = vmatpush2.msra.mxu0 %v431
        %1050 = vmatprep.subr.mxu0 %v428
        %1051 = vmatpush2.msra.mxu0 %v427
        %1052 = vmatprep.subr.mxu0 %v424
        %1053 = vmatpush2.msra.mxu0 %v423
        %1054 = vmatprep.mubr.f32.mxu0 %v772
        %1055 = vmatmul.mubr.f32.gmra.mxu0 %v771
        %v1056 = vpop.f32.mrf.mxu0
        %v1057 = vadd.f32 %v986, %v1056
        %v1058 = vpop.f32.mrf.mxu0
        %v1059 = vadd.f32 %v988, %v1058
        %1060 = vdwg.mxu0
        %v1061 = vmul.f32 %v915, 0.33333334
        %v1062 = vmul.f32 %v917, 0.33333334
        %v1063 = vmul.f32 %v1057, 0.33333334
        %v1064 = vmul.f32 %v1059, 0.33333334
        %v1065 = vadd.f32 %v773, %v1061
        %v1066 = vadd.f32 %v774, %v1062
        %v1067 = vadd.f32 %v775, %v1063
        %v1068 = vadd.f32 %v776, %v1064
        %1069 = vmatprep.subr.mxu0 %v290
        %1070 = vmatpush1.msra.mxu0 %v289
        %1071 = vmatprep.subr.mxu0 %v286
        %1072 = vmatpush1.msra.mxu0 %v285
        %1073 = vmatprep.subr.mxu0 %v282
        %1074 = vmatpush1.msra.mxu0 %v281
        %1075 = vmatprep.subr.mxu0 %v278
        %1076 = vmatpush1.msra.mxu0 %v277
        %1077 = vmatprep.subr.mxu0 %v274
        %1078 = vmatpush1.msra.mxu0 %v273
        %1079 = vmatprep.subr.mxu0 %v270
        %1080 = vmatpush1.msra.mxu0 %v269
        %1081 = vmatprep.subr.mxu0 %v266
        %1082 = vmatpush1.msra.mxu0 %v265
        %1083 = vmatprep.subr.mxu0 %v262
        %1084 = vmatpush1.msra.mxu0 %v261
        %1085 = vmatprep.subr.mxu0 %v258
        %1086 = vmatpush1.msra.mxu0 %v257
        %1087 = vmatprep.subr.mxu0 %v254
        %1088 = vmatpush1.msra.mxu0 %v253
        %1089 = vmatprep.subr.mxu0 %v250
        %1090 = vmatpush1.msra.mxu0 %v249
        %1091 = vmatprep.subr.mxu0 %v246
        %1092 = vmatpush1.msra.mxu0 %v245
        %1093 = vmatprep.subr.mxu0 %v242
        %1094 = vmatpush1.msra.mxu0 %v241
        %1095 = vmatprep.subr.mxu0 %v238
        %1096 = vmatpush1.msra.mxu0 %v237
        %1097 = vmatprep.subr.mxu0 %v234
        %1098 = vmatpush1.msra.mxu0 %v233
        %1099 = vmatprep.subr.mxu0 %v230
        %1100 = vmatpush1.msra.mxu0 %v229
        %1101 = vmatprep.subr.mxu0 %v354
        %1102 = vmatpush2.msra.mxu0 %v353
        %1103 = vmatprep.subr.mxu0 %v350
        %1104 = vmatpush2.msra.mxu0 %v349
        %1105 = vmatprep.subr.mxu0 %v346
        %1106 = vmatpush2.msra.mxu0 %v345
        %1107 = vmatprep.subr.mxu0 %v342
        %1108 = vmatpush2.msra.mxu0 %v341
        %1109 = vmatprep.subr.mxu0 %v338
        %1110 = vmatpush2.msra.mxu0 %v337
        %1111 = vmatprep.subr.mxu0 %v334
        %1112 = vmatpush2.msra.mxu0 %v333
        %1113 = vmatprep.subr.mxu0 %v330
        %1114 = vmatpush2.msra.mxu0 %v329
        %1115 = vmatprep.subr.mxu0 %v326
        %1116 = vmatpush2.msra.mxu0 %v325
        %1117 = vmatprep.subr.mxu0 %v322
        %1118 = vmatpush2.msra.mxu0 %v321
        %1119 = vmatprep.subr.mxu0 %v318
        %1120 = vmatpush2.msra.mxu0 %v317
        %1121 = vmatprep.subr.mxu0 %v314
        %1122 = vmatpush2.msra.mxu0 %v313
        %1123 = vmatprep.subr.mxu0 %v310
        %1124 = vmatpush2.msra.mxu0 %v309
        %1125 = vmatprep.subr.mxu0 %v306
        %1126 = vmatpush2.msra.mxu0 %v305
        %1127 = vmatprep.subr.mxu0 %v302
        %1128 = vmatpush2.msra.mxu0 %v301
        %1129 = vmatprep.subr.mxu0 %v298
        %1130 = vmatpush2.msra.mxu0 %v297
        %1131 = vmatprep.subr.mxu0 %v294
        %1132 = vmatpush2.msra.mxu0 %v293
        %1133 = vmatprep.mubr.f32.mxu0 %v1062
        %1134 = vmatmul.mubr.f32.gmra.mxu0 %v1061
        %v1135 = vpop.f32.mrf.mxu0
        %v1136 = vadd.f32 0.0, %v1135
        %v1137 = vpop.f32.mrf.mxu0
        %v1138 = vadd.f32 0.0, %v1137
        %1139 = vdwg.mxu0
        %1140 = vmatprep.subr.mxu0 %v418
        %1141 = vmatpush1.msra.mxu0 %v417
        %1142 = vmatprep.subr.mxu0 %v414
        %1143 = vmatpush1.msra.mxu0 %v413
        %1144 = vmatprep.subr.mxu0 %v410
        %1145 = vmatpush1.msra.mxu0 %v409
        %1146 = vmatprep.subr.mxu0 %v406
        %1147 = vmatpush1.msra.mxu0 %v405
        %1148 = vmatprep.subr.mxu0 %v402
        %1149 = vmatpush1.msra.mxu0 %v401
        %1150 = vmatprep.subr.mxu0 %v398
        %1151 = vmatpush1.msra.mxu0 %v397
        %1152 = vmatprep.subr.mxu0 %v394
        %1153 = vmatpush1.msra.mxu0 %v393
        %1154 = vmatprep.subr.mxu0 %v390
        %1155 = vmatpush1.msra.mxu0 %v389
        %1156 = vmatprep.subr.mxu0 %v386
        %1157 = vmatpush1.msra.mxu0 %v385
        %1158 = vmatprep.subr.mxu0 %v382
        %1159 = vmatpush1.msra.mxu0 %v381
        %1160 = vmatprep.subr.mxu0 %v378
        %1161 = vmatpush1.msra.mxu0 %v377
        %1162 = vmatprep.subr.mxu0 %v374
        %1163 = vmatpush1.msra.mxu0 %v373
        %1164 = vmatprep.subr.mxu0 %v370
        %1165 = vmatpush1.msra.mxu0 %v369
        %1166 = vmatprep.subr.mxu0 %v366
        %1167 = vmatpush1.msra.mxu0 %v365
        %1168 = vmatprep.subr.mxu0 %v362
        %1169 = vmatpush1.msra.mxu0 %v361
        %1170 = vmatprep.subr.mxu0 %v358
        %1171 = vmatpush1.msra.mxu0 %v357
        %1172 = vmatprep.subr.mxu0 %v482
        %1173 = vmatpush2.msra.mxu0 %v481
        %1174 = vmatprep.subr.mxu0 %v478
        %1175 = vmatpush2.msra.mxu0 %v477
        %1176 = vmatprep.subr.mxu0 %v474
        %1177 = vmatpush2.msra.mxu0 %v473
        %1178 = vmatprep.subr.mxu0 %v470
        %1179 = vmatpush2.msra.mxu0 %v469
        %1180 = vmatprep.subr.mxu0 %v466
        %1181 = vmatpush2.msra.mxu0 %v465
        %1182 = vmatprep.subr.mxu0 %v462
        %1183 = vmatpush2.msra.mxu0 %v461
        %1184 = vmatprep.subr.mxu0 %v458
        %1185 = vmatpush2.msra.mxu0 %v457
        %1186 = vmatprep.subr.mxu0 %v454
        %1187 = vmatpush2.msra.mxu0 %v453
        %1188 = vmatprep.subr.mxu0 %v450
        %1189 = vmatpush2.msra.mxu0 %v449
        %1190 = vmatprep.subr.mxu0 %v446
        %1191 = vmatpush2.msra.mxu0 %v445
        %1192 = vmatprep.subr.mxu0 %v442
        %1193 = vmatpush2.msra.mxu0 %v441
        %1194 = vmatprep.subr.mxu0 %v438
        %1195 = vmatpush2.msra.mxu0 %v437
        %1196 = vmatprep.subr.mxu0 %v434
        %1197 = vmatpush2.msra.mxu0 %v433
        %1198 = vmatprep.subr.mxu0 %v430
        %1199 = vmatpush2.msra.mxu0 %v429
        %1200 = vmatprep.subr.mxu0 %v426
        %1201 = vmatpush2.msra.mxu0 %v425
        %1202 = vmatprep.subr.mxu0 %v422
        %1203 = vmatpush2.msra.mxu0 %v421
        %1204 = vmatprep.mubr.f32.mxu0 %v1064
        %1205 = vmatmul.mubr.f32.gmra.mxu0 %v1063
        %v1206 = vpop.f32.mrf.mxu0
        %v1207 = vadd.f32 %v1136, %v1206
        %v1208 = vpop.f32.mrf.mxu0
        %v1209 = vadd.f32 %v1138, %v1208
        %1210 = vdwg.mxu0
        %1211 = vmatprep.subr.mxu0 %v292
        %1212 = vmatpush1.msra.mxu0 %v291
        %1213 = vmatprep.subr.mxu0 %v288
        %1214 = vmatpush1.msra.mxu0 %v287
        %1215 = vmatprep.subr.mxu0 %v284
        %1216 = vmatpush1.msra.mxu0 %v283
        %1217 = vmatprep.subr.mxu0 %v280
        %1218 = vmatpush1.msra.mxu0 %v279
        %1219 = vmatprep.subr.mxu0 %v276
        %1220 = vmatpush1.msra.mxu0 %v275
        %1221 = vmatprep.subr.mxu0 %v272
        %1222 = vmatpush1.msra.mxu0 %v271
        %1223 = vmatprep.subr.mxu0 %v268
        %1224 = vmatpush1.msra.mxu0 %v267
        %1225 = vmatprep.subr.mxu0 %v264
        %1226 = vmatpush1.msra.mxu0 %v263
        %1227 = vmatprep.subr.mxu0 %v260
        %1228 = vmatpush1.msra.mxu0 %v259
        %1229 = vmatprep.subr.mxu0 %v256
        %1230 = vmatpush1.msra.mxu0 %v255
        %1231 = vmatprep.subr.mxu0 %v252
        %1232 = vmatpush1.msra.mxu0 %v251
        %1233 = vmatprep.subr.mxu0 %v248
        %1234 = vmatpush1.msra.mxu0 %v247
        %1235 = vmatprep.subr.mxu0 %v244
        %1236 = vmatpush1.msra.mxu0 %v243
        %1237 = vmatprep.subr.mxu0 %v240
        %1238 = vmatpush1.msra.mxu0 %v239
        %1239 = vmatprep.subr.mxu0 %v236
        %1240 = vmatpush1.msra.mxu0 %v235
        %1241 = vmatprep.subr.mxu0 %v232
        %1242 = vmatpush1.msra.mxu0 %v231
        %1243 = vmatprep.subr.mxu0 %v356
        %1244 = vmatpush2.msra.mxu0 %v355
        %1245 = vmatprep.subr.mxu0 %v352
        %1246 = vmatpush2.msra.mxu0 %v351
        %1247 = vmatprep.subr.mxu0 %v348
        %1248 = vmatpush2.msra.mxu0 %v347
        %1249 = vmatprep.subr.mxu0 %v344
        %1250 = vmatpush2.msra.mxu0 %v343
        %1251 = vmatprep.subr.mxu0 %v340
        %1252 = vmatpush2.msra.mxu0 %v339
        %1253 = vmatprep.subr.mxu0 %v336
        %1254 = vmatpush2.msra.mxu0 %v335
        %1255 = vmatprep.subr.mxu0 %v332
        %1256 = vmatpush2.msra.mxu0 %v331
        %1257 = vmatprep.subr.mxu0 %v328
        %1258 = vmatpush2.msra.mxu0 %v327
        %1259 = vmatprep.subr.mxu0 %v324
        %1260 = vmatpush2.msra.mxu0 %v323
        %1261 = vmatprep.subr.mxu0 %v320
        %1262 = vmatpush2.msra.mxu0 %v319
        %1263 = vmatprep.subr.mxu0 %v316
        %1264 = vmatpush2.msra.mxu0 %v315
        %1265 = vmatprep.subr.mxu0 %v312
        %1266 = vmatpush2.msra.mxu0 %v311
        %1267 = vmatprep.subr.mxu0 %v308
        %1268 = vmatpush2.msra.mxu0 %v307
        %1269 = vmatprep.subr.mxu0 %v304
        %1270 = vmatpush2.msra.mxu0 %v303
        %1271 = vmatprep.subr.mxu0 %v300
        %1272 = vmatpush2.msra.mxu0 %v299
        %1273 = vmatprep.subr.mxu0 %v296
        %1274 = vmatpush2.msra.mxu0 %v295
        %1275 = vmatprep.mubr.f32.mxu0 %v1062
        %1276 = vmatmul.mubr.f32.gmra.mxu0 %v1061
        %v1277 = vpop.f32.mrf.mxu0
        %v1278 = vadd.f32 0.0, %v1277
        %v1279 = vpop.f32.mrf.mxu0
        %v1280 = vadd.f32 0.0, %v1279
        %1281 = vdwg.mxu0
        %1282 = vmatprep.subr.mxu0 %v420
        %1283 = vmatpush1.msra.mxu0 %v419
        %1284 = vmatprep.subr.mxu0 %v416
        %1285 = vmatpush1.msra.mxu0 %v415
        %1286 = vmatprep.subr.mxu0 %v412
        %1287 = vmatpush1.msra.mxu0 %v411
        %1288 = vmatprep.subr.mxu0 %v408
        %1289 = vmatpush1.msra.mxu0 %v407
        %1290 = vmatprep.subr.mxu0 %v404
        %1291 = vmatpush1.msra.mxu0 %v403
        %1292 = vmatprep.subr.mxu0 %v400
        %1293 = vmatpush1.msra.mxu0 %v399
        %1294 = vmatprep.subr.mxu0 %v396
        %1295 = vmatpush1.msra.mxu0 %v395
        %1296 = vmatprep.subr.mxu0 %v392
        %1297 = vmatpush1.msra.mxu0 %v391
        %1298 = vmatprep.subr.mxu0 %v388
        %1299 = vmatpush1.msra.mxu0 %v387
        %1300 = vmatprep.subr.mxu0 %v384
        %1301 = vmatpush1.msra.mxu0 %v383
        %1302 = vmatprep.subr.mxu0 %v380
        %1303 = vmatpush1.msra.mxu0 %v379
        %1304 = vmatprep.subr.mxu0 %v376
        %1305 = vmatpush1.msra.mxu0 %v375
        %1306 = vmatprep.subr.mxu0 %v372
        %1307 = vmatpush1.msra.mxu0 %v371
        %1308 = vmatprep.subr.mxu0 %v368
        %1309 = vmatpush1.msra.mxu0 %v367
        %1310 = vmatprep.subr.mxu0 %v364
        %1311 = vmatpush1.msra.mxu0 %v363
        %1312 = vmatprep.subr.mxu0 %v360
        %1313 = vmatpush1.msra.mxu0 %v359
        %1314 = vmatprep.subr.mxu0 %v484
        %1315 = vmatpush2.msra.mxu0 %v483
        %1316 = vmatprep.subr.mxu0 %v480
        %1317 = vmatpush2.msra.mxu0 %v479
        %1318 = vmatprep.subr.mxu0 %v476
        %1319 = vmatpush2.msra.mxu0 %v475
        %1320 = vmatprep.subr.mxu0 %v472
        %1321 = vmatpush2.msra.mxu0 %v471
        %1322 = vmatprep.subr.mxu0 %v468
        %1323 = vmatpush2.msra.mxu0 %v467
        %1324 = vmatprep.subr.mxu0 %v464
        %1325 = vmatpush2.msra.mxu0 %v463
        %1326 = vmatprep.subr.mxu0 %v460
        %1327 = vmatpush2.msra.mxu0 %v459
        %1328 = vmatprep.subr.mxu0 %v456
        %1329 = vmatpush2.msra.mxu0 %v455
        %1330 = vmatprep.subr.mxu0 %v452
        %1331 = vmatpush2.msra.mxu0 %v451
        %1332 = vmatprep.subr.mxu0 %v448
        %1333 = vmatpush2.msra.mxu0 %v447
        %1334 = vmatprep.subr.mxu0 %v444
        %1335 = vmatpush2.msra.mxu0 %v443
        %1336 = vmatprep.subr.mxu0 %v440
        %1337 = vmatpush2.msra.mxu0 %v439
        %1338 = vmatprep.subr.mxu0 %v436
        %1339 = vmatpush2.msra.mxu0 %v435
        %1340 = vmatprep.subr.mxu0 %v432
        %1341 = vmatpush2.msra.mxu0 %v431
        %1342 = vmatprep.subr.mxu0 %v428
        %1343 = vmatpush2.msra.mxu0 %v427
        %1344 = vmatprep.subr.mxu0 %v424
        %1345 = vmatpush2.msra.mxu0 %v423
        %1346 = vmatprep.mubr.f32.mxu0 %v1064
        %1347 = vmatmul.mubr.f32.gmra.mxu0 %v1063
        %v1348 = vpop.f32.mrf.mxu0
        %v1349 = vadd.f32 %v1278, %v1348
        %v1350 = vpop.f32.mrf.mxu0
        %v1351 = vadd.f32 %v1280, %v1350
        %1352 = vdwg.mxu0
        %v1353 = vmul.f32 %v1207, 0.25
        %v1354 = vmul.f32 %v1209, 0.25
        %v1355 = vmul.f32 %v1349, 0.25
        %v1356 = vmul.f32 %v1351, 0.25
        %v1357 = vadd.f32 %v1065, %v1353
        %v1358 = vadd.f32 %v1066, %v1354
        %v1359 = vadd.f32 %v1067, %v1355
        %v1360 = vadd.f32 %v1068, %v1356
        %1361 = vmatprep.subr.mxu0 %v290
        %1362 = vmatpush1.msra.mxu0 %v289
        %1363 = vmatprep.subr.mxu0 %v286
        %1364 = vmatpush1.msra.mxu0 %v285
        %1365 = vmatprep.subr.mxu0 %v282
        %1366 = vmatpush1.msra.mxu0 %v281
        %1367 = vmatprep.subr.mxu0 %v278
        %1368 = vmatpush1.msra.mxu0 %v277
        %1369 = vmatprep.subr.mxu0 %v274
        %1370 = vmatpush1.msra.mxu0 %v273
        %1371 = vmatprep.subr.mxu0 %v270
        %1372 = vmatpush1.msra.mxu0 %v269
        %1373 = vmatprep.subr.mxu0 %v266
        %1374 = vmatpush1.msra.mxu0 %v265
        %1375 = vmatprep.subr.mxu0 %v262
        %1376 = vmatpush1.msra.mxu0 %v261
        %1377 = vmatprep.subr.mxu0 %v258
        %1378 = vmatpush1.msra.mxu0 %v257
        %1379 = vmatprep.subr.mxu0 %v254
        %1380 = vmatpush1.msra.mxu0 %v253
        %1381 = vmatprep.subr.mxu0 %v250
        %1382 = vmatpush1.msra.mxu0 %v249
        %1383 = vmatprep.subr.mxu0 %v246
        %1384 = vmatpush1.msra.mxu0 %v245
        %1385 = vmatprep.subr.mxu0 %v242
        %1386 = vmatpush1.msra.mxu0 %v241
        %1387 = vmatprep.subr.mxu0 %v238
        %1388 = vmatpush1.msra.mxu0 %v237
        %1389 = vmatprep.subr.mxu0 %v234
        %1390 = vmatpush1.msra.mxu0 %v233
        %1391 = vmatprep.subr.mxu0 %v230
        %1392 = vmatpush1.msra.mxu0 %v229
        %1393 = vmatprep.subr.mxu0 %v354
        %1394 = vmatpush2.msra.mxu0 %v353
        %1395 = vmatprep.subr.mxu0 %v350
        %1396 = vmatpush2.msra.mxu0 %v349
        %1397 = vmatprep.subr.mxu0 %v346
        %1398 = vmatpush2.msra.mxu0 %v345
        %1399 = vmatprep.subr.mxu0 %v342
        %1400 = vmatpush2.msra.mxu0 %v341
        %1401 = vmatprep.subr.mxu0 %v338
        %1402 = vmatpush2.msra.mxu0 %v337
        %1403 = vmatprep.subr.mxu0 %v334
        %1404 = vmatpush2.msra.mxu0 %v333
        %1405 = vmatprep.subr.mxu0 %v330
        %1406 = vmatpush2.msra.mxu0 %v329
        %1407 = vmatprep.subr.mxu0 %v326
        %1408 = vmatpush2.msra.mxu0 %v325
        %1409 = vmatprep.subr.mxu0 %v322
        %1410 = vmatpush2.msra.mxu0 %v321
        %1411 = vmatprep.subr.mxu0 %v318
        %1412 = vmatpush2.msra.mxu0 %v317
        %1413 = vmatprep.subr.mxu0 %v314
        %1414 = vmatpush2.msra.mxu0 %v313
        %1415 = vmatprep.subr.mxu0 %v310
        %1416 = vmatpush2.msra.mxu0 %v309
        %1417 = vmatprep.subr.mxu0 %v306
        %1418 = vmatpush2.msra.mxu0 %v305
        %1419 = vmatprep.subr.mxu0 %v302
        %1420 = vmatpush2.msra.mxu0 %v301
        %1421 = vmatprep.subr.mxu0 %v298
        %1422 = vmatpush2.msra.mxu0 %v297
        %1423 = vmatprep.subr.mxu0 %v294
        %1424 = vmatpush2.msra.mxu0 %v293
        %1425 = vmatprep.mubr.f32.mxu0 %v1354
        %1426 = vmatmul.mubr.f32.gmra.mxu0 %v1353
        %v1427 = vpop.f32.mrf.mxu0
        %v1428 = vadd.f32 0.0, %v1427
        %v1429 = vpop.f32.mrf.mxu0
        %v1430 = vadd.f32 0.0, %v1429
        %1431 = vdwg.mxu0
        %1432 = vmatprep.subr.mxu0 %v418
        %1433 = vmatpush1.msra.mxu0 %v417
        %1434 = vmatprep.subr.mxu0 %v414
        %1435 = vmatpush1.msra.mxu0 %v413
        %1436 = vmatprep.subr.mxu0 %v410
        %1437 = vmatpush1.msra.mxu0 %v409
        %1438 = vmatprep.subr.mxu0 %v406
        %1439 = vmatpush1.msra.mxu0 %v405
        %1440 = vmatprep.subr.mxu0 %v402
        %1441 = vmatpush1.msra.mxu0 %v401
        %1442 = vmatprep.subr.mxu0 %v398
        %1443 = vmatpush1.msra.mxu0 %v397
        %1444 = vmatprep.subr.mxu0 %v394
        %1445 = vmatpush1.msra.mxu0 %v393
        %1446 = vmatprep.subr.mxu0 %v390
        %1447 = vmatpush1.msra.mxu0 %v389
        %1448 = vmatprep.subr.mxu0 %v386
        %1449 = vmatpush1.msra.mxu0 %v385
        %1450 = vmatprep.subr.mxu0 %v382
        %1451 = vmatpush1.msra.mxu0 %v381
        %1452 = vmatprep.subr.mxu0 %v378
        %1453 = vmatpush1.msra.mxu0 %v377
        %1454 = vmatprep.subr.mxu0 %v374
        %1455 = vmatpush1.msra.mxu0 %v373
        %1456 = vmatprep.subr.mxu0 %v370
        %1457 = vmatpush1.msra.mxu0 %v369
        %1458 = vmatprep.subr.mxu0 %v366
        %1459 = vmatpush1.msra.mxu0 %v365
        %1460 = vmatprep.subr.mxu0 %v362
        %1461 = vmatpush1.msra.mxu0 %v361
        %1462 = vmatprep.subr.mxu0 %v358
        %1463 = vmatpush1.msra.mxu0 %v357
        %1464 = vmatprep.subr.mxu0 %v482
        %1465 = vmatpush2.msra.mxu0 %v481
        %1466 = vmatprep.subr.mxu0 %v478
        %1467 = vmatpush2.msra.mxu0 %v477
        %1468 = vmatprep.subr.mxu0 %v474
        %1469 = vmatpush2.msra.mxu0 %v473
        %1470 = vmatprep.subr.mxu0 %v470
        %1471 = vmatpush2.msra.mxu0 %v469
        %1472 = vmatprep.subr.mxu0 %v466
        %1473 = vmatpush2.msra.mxu0 %v465
        %1474 = vmatprep.subr.mxu0 %v462
        %1475 = vmatpush2.msra.mxu0 %v461
        %1476 = vmatprep.subr.mxu0 %v458
        %1477 = vmatpush2.msra.mxu0 %v457
        %1478 = vmatprep.subr.mxu0 %v454
        %1479 = vmatpush2.msra.mxu0 %v453
        %1480 = vmatprep.subr.mxu0 %v450
        %1481 = vmatpush2.msra.mxu0 %v449
        %1482 = vmatprep.subr.mxu0 %v446
        %1483 = vmatpush2.msra.mxu0 %v445
        %1484 = vmatprep.subr.mxu0 %v442
        %1485 = vmatpush2.msra.mxu0 %v441
        %1486 = vmatprep.subr.mxu0 %v438
        %1487 = vmatpush2.msra.mxu0 %v437
        %1488 = vmatprep.subr.mxu0 %v434
        %1489 = vmatpush2.msra.mxu0 %v433
        %1490 = vmatprep.subr.mxu0 %v430
        %1491 = vmatpush2.msra.mxu0 %v429
        %1492 = vmatprep.subr.mxu0 %v426
        %1493 = vmatpush2.msra.mxu0 %v425
        %1494 = vmatprep.subr.mxu0 %v422
        %1495 = vmatpush2.msra.mxu0 %v421
        %1496 = vmatprep.mubr.f32.mxu0 %v1356
        %1497 = vmatmul.mubr.f32.gmra.mxu0 %v1355
        %v1498 = vpop.f32.mrf.mxu0
        %v1499 = vadd.f32 %v1428, %v1498
        %v1500 = vpop.f32.mrf.mxu0
        %v1501 = vadd.f32 %v1430, %v1500
        %1502 = vdwg.mxu0
        %1503 = vmatprep.subr.mxu0 %v292
        %1504 = vmatpush1.msra.mxu0 %v291
        %1505 = vmatprep.subr.mxu0 %v288
        %1506 = vmatpush1.msra.mxu0 %v287
        %1507 = vmatprep.subr.mxu0 %v284
        %1508 = vmatpush1.msra.mxu0 %v283
        %1509 = vmatprep.subr.mxu0 %v280
        %1510 = vmatpush1.msra.mxu0 %v279
        %1511 = vmatprep.subr.mxu0 %v276
        %1512 = vmatpush1.msra.mxu0 %v275
        %1513 = vmatprep.subr.mxu0 %v272
        %1514 = vmatpush1.msra.mxu0 %v271
        %1515 = vmatprep.subr.mxu0 %v268
        %1516 = vmatpush1.msra.mxu0 %v267
        %1517 = vmatprep.subr.mxu0 %v264
        %1518 = vmatpush1.msra.mxu0 %v263
        %1519 = vmatprep.subr.mxu0 %v260
        %1520 = vmatpush1.msra.mxu0 %v259
        %1521 = vmatprep.subr.mxu0 %v256
        %1522 = vmatpush1.msra.mxu0 %v255
        %1523 = vmatprep.subr.mxu0 %v252
        %1524 = vmatpush1.msra.mxu0 %v251
        %1525 = vmatprep.subr.mxu0 %v248
        %1526 = vmatpush1.msra.mxu0 %v247
        %1527 = vmatprep.subr.mxu0 %v244
        %1528 = vmatpush1.msra.mxu0 %v243
        %1529 = vmatprep.subr.mxu0 %v240
        %1530 = vmatpush1.msra.mxu0 %v239
        %1531 = vmatprep.subr.mxu0 %v236
        %1532 = vmatpush1.msra.mxu0 %v235
        %1533 = vmatprep.subr.mxu0 %v232
        %1534 = vmatpush1.msra.mxu0 %v231
        %1535 = vmatprep.subr.mxu0 %v356
        %1536 = vmatpush2.msra.mxu0 %v355
        %1537 = vmatprep.subr.mxu0 %v352
        %1538 = vmatpush2.msra.mxu0 %v351
        %1539 = vmatprep.subr.mxu0 %v348
        %1540 = vmatpush2.msra.mxu0 %v347
        %1541 = vmatprep.subr.mxu0 %v344
        %1542 = vmatpush2.msra.mxu0 %v343
        %1543 = vmatprep.subr.mxu0 %v340
        %1544 = vmatpush2.msra.mxu0 %v339
        %1545 = vmatprep.subr.mxu0 %v336
        %1546 = vmatpush2.msra.mxu0 %v335
        %1547 = vmatprep.subr.mxu0 %v332
        %1548 = vmatpush2.msra.mxu0 %v331
        %1549 = vmatprep.subr.mxu0 %v328
        %1550 = vmatpush2.msra.mxu0 %v327
        %1551 = vmatprep.subr.mxu0 %v324
        %1552 = vmatpush2.msra.mxu0 %v323
        %1553 = vmatprep.subr.mxu0 %v320
        %1554 = vmatpush2.msra.mxu0 %v319
        %1555 = vmatprep.subr.mxu0 %v316
        %1556 = vmatpush2.msra.mxu0 %v315
        %1557 = vmatprep.subr.mxu0 %v312
        %1558 = vmatpush2.msra.mxu0 %v311
        %1559 = vmatprep.subr.mxu0 %v308
        %1560 = vmatpush2.msra.mxu0 %v307
        %1561 = vmatprep.subr.mxu0 %v304
        %1562 = vmatpush2.msra.mxu0 %v303
        %1563 = vmatprep.subr.mxu0 %v300
        %1564 = vmatpush2.msra.mxu0 %v299
        %1565 = vmatprep.subr.mxu0 %v296
        %1566 = vmatpush2.msra.mxu0 %v295
        %1567 = vmatprep.mubr.f32.mxu0 %v1354
        %1568 = vmatmul.mubr.f32.gmra.mxu0 %v1353
        %v1569 = vpop.f32.mrf.mxu0
        %v1570 = vadd.f32 0.0, %v1569
        %v1571 = vpop.f32.mrf.mxu0
        %v1572 = vadd.f32 0.0, %v1571
        %1573 = vdwg.mxu0
        %1574 = vmatprep.subr.mxu0 %v420
        %1575 = vmatpush1.msra.mxu0 %v419
        %1576 = vmatprep.subr.mxu0 %v416
        %1577 = vmatpush1.msra.mxu0 %v415
        %1578 = vmatprep.subr.mxu0 %v412
        %1579 = vmatpush1.msra.mxu0 %v411
        %1580 = vmatprep.subr.mxu0 %v408
        %1581 = vmatpush1.msra.mxu0 %v407
        %1582 = vmatprep.subr.mxu0 %v404
        %1583 = vmatpush1.msra.mxu0 %v403
        %1584 = vmatprep.subr.mxu0 %v400
        %1585 = vmatpush1.msra.mxu0 %v399
        %1586 = vmatprep.subr.mxu0 %v396
        %1587 = vmatpush1.msra.mxu0 %v395
        %1588 = vmatprep.subr.mxu0 %v392
        %1589 = vmatpush1.msra.mxu0 %v391
        %1590 = vmatprep.subr.mxu0 %v388
        %1591 = vmatpush1.msra.mxu0 %v387
        %1592 = vmatprep.subr.mxu0 %v384
        %1593 = vmatpush1.msra.mxu0 %v383
        %1594 = vmatprep.subr.mxu0 %v380
        %1595 = vmatpush1.msra.mxu0 %v379
        %1596 = vmatprep.subr.mxu0 %v376
        %1597 = vmatpush1.msra.mxu0 %v375
        %1598 = vmatprep.subr.mxu0 %v372
        %1599 = vmatpush1.msra.mxu0 %v371
        %1600 = vmatprep.subr.mxu0 %v368
        %1601 = vmatpush1.msra.mxu0 %v367
        %1602 = vmatprep.subr.mxu0 %v364
        %1603 = vmatpush1.msra.mxu0 %v363
        %1604 = vmatprep.subr.mxu0 %v360
        %1605 = vmatpush1.msra.mxu0 %v359
        %1606 = vmatprep.subr.mxu0 %v484
        %1607 = vmatpush2.msra.mxu0 %v483
        %1608 = vmatprep.subr.mxu0 %v480
        %1609 = vmatpush2.msra.mxu0 %v479
        %1610 = vmatprep.subr.mxu0 %v476
        %1611 = vmatpush2.msra.mxu0 %v475
        %1612 = vmatprep.subr.mxu0 %v472
        %1613 = vmatpush2.msra.mxu0 %v471
        %1614 = vmatprep.subr.mxu0 %v468
        %1615 = vmatpush2.msra.mxu0 %v467
        %1616 = vmatprep.subr.mxu0 %v464
        %1617 = vmatpush2.msra.mxu0 %v463
        %1618 = vmatprep.subr.mxu0 %v460
        %1619 = vmatpush2.msra.mxu0 %v459
        %1620 = vmatprep.subr.mxu0 %v456
        %1621 = vmatpush2.msra.mxu0 %v455
        %1622 = vmatprep.subr.mxu0 %v452
        %1623 = vmatpush2.msra.mxu0 %v451
        %1624 = vmatprep.subr.mxu0 %v448
        %1625 = vmatpush2.msra.mxu0 %v447
        %1626 = vmatprep.subr.mxu0 %v444
        %1627 = vmatpush2.msra.mxu0 %v443
        %1628 = vmatprep.subr.mxu0 %v440
        %1629 = vmatpush2.msra.mxu0 %v439
        %1630 = vmatprep.subr.mxu0 %v436
        %1631 = vmatpush2.msra.mxu0 %v435
        %1632 = vmatprep.subr.mxu0 %v432
        %1633 = vmatpush2.msra.mxu0 %v431
        %1634 = vmatprep.subr.mxu0 %v428
        %1635 = vmatpush2.msra.mxu0 %v427
        %1636 = vmatprep.subr.mxu0 %v424
        %1637 = vmatpush2.msra.mxu0 %v423
        %1638 = vmatprep.mubr.f32.mxu0 %v1356
        %1639 = vmatmul.mubr.f32.gmra.mxu0 %v1355
        %v1640 = vpop.f32.mrf.mxu0
        %v1641 = vadd.f32 %v1570, %v1640
        %v1642 = vpop.f32.mrf.mxu0
        %v1643 = vadd.f32 %v1572, %v1642
        %1644 = vdwg.mxu0
        %v1645 = vmul.f32 %v1499, 0.2
        %v1646 = vmul.f32 %v1501, 0.2
        %v1647 = vmul.f32 %v1641, 0.2
        %v1648 = vmul.f32 %v1643, 0.2
        %v1649 = vadd.f32 %v1357, %v1645
        %v1650 = vadd.f32 %v1358, %v1646
        %v1651 = vadd.f32 %v1359, %v1647
        %v1652 = vadd.f32 %v1360, %v1648
        %1653 = vst [vmem:[%s199] sm:$0xff] %v1649
        %1654 = vst [vmem:[%s199 + $0x8] sm:$0xff] %v1650
        %1655 = vst [vmem:[%s199 + $0x10] sm:$0xff] %v1651
        %1656 = vst [vmem:[%s199 + $0x18] sm:$0xff] %v1652
        %s1657 = sand.u32 %s82, 1
        %s1658 = scalar_lea.sflag [#allocation4], %s1657
        %s1659 = sand.u32 %s82, 1
        %s1660 = smul.addr %s1659, 32
        %s1661 = scalar_lea.vmem [#allocation7], %s1660
        // Predicated region
        $region37: #{tpu_custom_call.1} parent=27 // pred_check
          %p1662 = pneg %p92
        $region38: #{tpu_custom_call.1} parent=27 // pred_check_branch
          %1664 = sbr.rel (%p1662) target = $region40
        $region39: #{tpu_custom_call.1} parent=27 // pred_region
          %s1666 = ssub.s32 512, 512
          %1667 = vsyncadd %s1658, %s1666
          %s1668 = smul.addr %s22, 4
          %s1669 = smul.addr %s1668, 128
          %s1670 = scalar_lea.hbm %s2, %s1669
          %s1672 = sshll.u32 %s1661, 4
          %s1673 = int_to_ptr.vmem [resolvable:$true] %s1672
          %1675 = dma.vmem_to_hbm [thread:$0]  %s1673, 512, %s1670, %s1658
        $region40: #{tpu_custom_call.1} parent=27 // pred_fallthru
          _
      $region28: #{tpu_custom_call.1} parent=5 // pred_fallthru
        _
      %p1676 = scmp.le.s32.totalorder 2, %s17
      // Predicated region
      $region41: #{tpu_custom_call.1} parent=5 // pred_check
        %p1677 = pneg %p1676
      $region42: #{tpu_custom_call.1} parent=5 // pred_check_branch
        %1679 = sbr.rel (%p1677) target = $region44
      $region43: #{tpu_custom_call.1} parent=5 // pred_region
        %s1680 = ssub.s32 %s17, 2
        // Predicated region
        $region45: #{tpu_custom_call.1} parent=43 // pred_check
          %p1681 = pneg %p98
        $region46: #{tpu_custom_call.1} parent=43 // pred_check_branch
          %1683 = sbr.rel (%p1681) target = $region48
        $region47: #{tpu_custom_call.1} parent=43 // pred_region
          %s1684 = sand.u32 %s83, 1
          %s1685 = scalar_lea.sflag [#allocation4], %s1684
          %s1686 = sand.u32 %s83, 1
          %s1687 = smul.addr %s1686, 32
          %s1688 = scalar_lea.vmem [#allocation7], %s1687
          %1689 = dma.done %s1685, 512
        $region48: #{tpu_custom_call.1} parent=43 // pred_fallthru
          _
      $region44: #{tpu_custom_call.1} parent=5 // pred_fallthru
        _
    $region6: #{tpu_custom_call.1} parent=1 // loop_footer
      %s21 = sadd.s32 1, %s17
    $region7: #{tpu_custom_call.1} parent=1 // loop_footer_branch
      %16 = sbr.rel target = $region3
    $region8: #{tpu_custom_call.1} parent=1 // loop_exit
      _
    %1690 = vsyncpa [#allocation3], 1
    %s1691 = scalar_lea.sflag [#allocation3], 1
    %1692 = vsyncpa %s1691, 1
    %1693 = vsyncpa [#allocation6], 1
    %s1694 = scalar_lea.sflag [#allocation6], 1
    %1695 = vsyncpa %s1694, 1
    %1696 = vsyncpa [#allocation4], 1
    %s1697 = scalar_lea.sflag [#allocation4], 1
    %1698 = vsyncpa %s1697, 1

</llo_original>
